<compile_context>
chip_gen: v7x
topology: tpu7x:2x2x1
jax: 0.10.0
libtpu: 0.0.40
codegen_flags: <defaults>
</compile_context>

<pallas_src>
import functools

import jax
import jax.numpy as jnp
from jax.experimental import pallas as pl
from jax.experimental.pallas import tpu as pltpu


LANE = 128          # lane width: pad all matmul dims to multiples of this
MAX_TILE_M = 512    # cap on batch rows per grid step (multiple of 256 for v6e/v7x)
SUBLANE_BF16 = 16   # bf16 sublane packing -> minimum useful batch-tile height


def _round_up(n, m):
    return (n + m - 1) // m * m


def decoder_mlp_kernel(x_ref,
                       w1_ref, b1_ref,
                       w2_ref, b2_ref,
                       w3_ref, b3_ref,
                       w4_ref, b4_ref,
                       o_ref, acc_ref):
    # Grid = (batch_tiles, k_chunks).  At step (i, k) compute the k-th chunk of
    # layer-1's output (ReLU'd) and accumulate its layer-2 contribution into an
    # f32 scratch; layers 3/4 + bias/store run once per batch tile on the last
    # k step.  This overlaps the dominant w1/w2 chunk DMAs with compute.
    k = pl.program_id(1)

    @pl.when(k == 0)
    def _():
        acc_ref[...] = jnp.zeros_like(acc_ref)

    h1 = jnp.dot(x_ref[...], w1_ref[...], preferred_element_type=jnp.float32)
    h1 = jnp.maximum(h1 + b1_ref[...], 0.0).astype(jnp.bfloat16)
    acc_ref[...] += jnp.dot(h1, w2_ref[...], preferred_element_type=jnp.float32)

    @pl.when(k == pl.num_programs(1) - 1)
    def _():
        h2 = jnp.maximum(acc_ref[...] + b2_ref[...], 0.0).astype(jnp.bfloat16)
        h3 = jnp.dot(h2, w3_ref[...], preferred_element_type=jnp.float32)
        h3 = jnp.maximum(h3 + b3_ref[...], 0.0).astype(jnp.bfloat16)
        out = jnp.dot(h3, w4_ref[...], preferred_element_type=jnp.float32)
        o_ref[...] = (out + b4_ref[...]).astype(o_ref.dtype)


@functools.partial(jax.jit, static_argnames=("input_dim",))
def decoder_forward(x, kparams, *, input_dim):
    """x: (batch, feature_dim) f32. kparams: padded bf16 weights / f32 biases."""
    batch, feat = x.shape
    d_in_p, hid1_p = kparams["w1"].shape     # padded feature dim / 2048
    hid2_p = kparams["w2"].shape[1]          # 512
    d_out_p = kparams["w4"].shape[1]         # padded output dim

    # Adaptive batch tile: small batches use a 16-row tile (bf16 sublane pack)
    # instead of padding to 128; large batches use 512-row tiles.
    tile_m = min(MAX_TILE_M, _round_up(batch, SUBLANE_BF16))
    m_pad = _round_up(batch, tile_m)
    m_tiles = m_pad // tile_m

    # Stream w1/w2 in K chunks only when there's a single batch tile (each
    # weight byte is used exactly once, so chunk DMAs overlap compute).  With
    # multiple batch tiles keep them fully VMEM-resident across the grid.
    n_k = 8 if m_tiles == 1 else 1
    k_chunk = hid1_p // n_k

    # Zero-pad batch / feature dims (exact: padded rows/cols are zero) and cast
    # activations to bf16 (dots still accumulate in f32 on the MXU).
    x_p = jnp.pad(x.astype(jnp.bfloat16),
                  ((0, m_pad - batch), (0, d_in_p - feat)))

    grid_spec = pltpu.PrefetchScalarGridSpec(
        num_scalar_prefetch=0,
        grid=(m_tiles, n_k),
        in_specs=[
            pl.BlockSpec((tile_m, d_in_p), lambda i, k: (i, 0)),    # x tile
            pl.BlockSpec((d_in_p, k_chunk), lambda i, k: (0, k)),   # w1 chunk
            pl.BlockSpec((1, k_chunk), lambda i, k: (0, k)),        # b1 chunk
            pl.BlockSpec((k_chunk, hid2_p), lambda i, k: (k, 0)),   # w2 chunk
            pl.BlockSpec((1, hid2_p), lambda i, k: (0, 0)),         # b2 (resident)
            pl.BlockSpec((hid2_p, hid2_p), lambda i, k: (0, 0)),    # w3 (resident)
            pl.BlockSpec((1, hid2_p), lambda i, k: (0, 0)),         # b3 (resident)
            pl.BlockSpec((hid2_p, d_out_p), lambda i, k: (0, 0)),   # w4 (resident)
            pl.BlockSpec((1, d_out_p), lambda i, k: (0, 0)),        # b4 (resident)
        ],
        out_specs=pl.BlockSpec((tile_m, d_out_p), lambda i, k: (i, 0)),
        scratch_shapes=[pltpu.VMEM((tile_m, hid2_p), jnp.float32)],
    )

    # VMEM budget from the actual working set (double-buffered blocks + scratch
    # + f32 intermediates), 2x headroom, capped below v7x's 32 MiB scoped
    # default (64 MiB physical per TC).
    work = (
        2 * tile_m * d_in_p * 2                                  # x tile (bf16)
        + 2 * tile_m * d_out_p * 4                               # out tile (f32)
        + 2 * (d_in_p * k_chunk + k_chunk * hid2_p) * 2          # w1/w2 chunks
        + 2 * (hid2_p * hid2_p + hid2_p * d_out_p) * 2           # w3/w4
        + 2 * (k_chunk + 2 * hid2_p + d_out_p) * 4               # biases
        + tile_m * hid2_p * 4                                    # accumulator
        + tile_m * (k_chunk + 2 * hid2_p + d_out_p) * 4          # intermediates
    )
    vmem_limit = int(min(max(2 * work, 16 << 20), 30 << 20))

    out_p = pl.pallas_call(
        decoder_mlp_kernel,
        out_shape=jax.ShapeDtypeStruct((m_pad, d_out_p), jnp.float32),
        grid_spec=grid_spec,
        compiler_params=pltpu.CompilerParams(
            # Batch axis parallel (lets v7x split batch tiles across its 2 TCs
            # when m_tiles > 1; at m_tiles == 1 only one core runs, avoiding a
            # doubled weight DMA).  Chunk/reduction axis must be "arbitrary".
            dimension_semantics=("parallel", "arbitrary"),
            vmem_limit_bytes=vmem_limit,
        ),
    )(x_p,
      kparams["w1"], kparams["b1"],
      kparams["w2"], kparams["b2"],
      kparams["w3"], kparams["b3"],
      kparams["w4"], kparams["b4"])

    return out_p[:batch, :input_dim]


def init_decoder_params(key, feature_dim, input_dim):
    """Returns (kernel_params, reference_params).

    kernel_params: lane-padded, weights bf16, biases f32 (shape (1, d_out_p)).
    reference_params: original unpadded f32 (for the pure-JAX reference).
    """
    dims = [(feature_dim, 2000), (2000, 500), (500, 500), (500, input_dim)]
    ref_params, kern_params = {}, {}
    for i, (d_in, d_out) in enumerate(dims, start=1):
        key, kw, kb = jax.random.split(key, 3)
        scale = 1.0 / jnp.sqrt(jnp.float32(d_in))
        w = jax.random.uniform(kw, (d_in, d_out), jnp.float32, -scale, scale)
        b = jax.random.uniform(kb, (1, d_out), jnp.float32, -scale, scale)
        ref_params[f"w{i}"] = w
        ref_params[f"b{i}"] = b

        d_in_p = _round_up(d_in, LANE)
        d_out_p = _round_up(d_out, LANE)
        w_p = jnp.zeros((d_in_p, d_out_p), jnp.float32).at[:d_in, :d_out].set(w)
        b_p = jnp.zeros((1, d_out_p), jnp.float32).at[:, :d_out].set(b)
        kern_params[f"w{i}"] = w_p.astype(jnp.bfloat16)
        kern_params[f"b{i}"] = b_p   # biases stay f32 (tiny; exact add)
    # TODO(synk): int8 per-output-channel weight quantization would halve the
    # dominant weight DMA on v5e/v6e (MXU int8 path); not portable to v7x
    # (fp8-only MXU), so it would need a pltpu.get_tpu_info() gate.
    return kern_params, ref_params


def decoder_forward_ref_f32(x, p):
    h = jnp.maximum(x @ p["w1"] + p["b1"], 0.0)
    h = jnp.maximum(h @ p["w2"] + p["b2"], 0.0)
    h = jnp.maximum(h @ p["w3"] + p["b3"], 0.0)
    return h @ p["w4"] + p["b4"]


def decoder_forward_ref_bf16(x, p):
    # Matches the kernel's numerics: bf16 weights/activations, f32 accumulate.
    h = x.astype(jnp.bfloat16)
    for i in (1, 2, 3):
        h = jnp.dot(h, p[f"w{i}"].astype(jnp.bfloat16),
                    preferred_element_type=jnp.float32)
        h = jnp.maximum(h + p[f"b{i}"], 0.0).astype(jnp.bfloat16)
    out = jnp.dot(h, p["w4"].astype(jnp.bfloat16),
                  preferred_element_type=jnp.float32)
    return out + p["b4"]


if __name__ == "__main__":
    batch = 8
    feature_dim = 64   # zPrivate_dim + zShared_dim (+ extras) in original model
    input_dim = 128    # small synthetic output dimension

    key = jax.random.PRNGKey(0)
    key, kx = jax.random.split(key)
    x = jax.random.uniform(kx, (batch, feature_dim), jnp.float32)

    kparams, ref_params = init_decoder_params(key, feature_dim, input_dim)

    out = decoder_forward(x, kparams, input_dim=input_dim)
    out = jax.block_until_ready(out)
    assert out.shape == (batch, input_dim)

    ref_bf16 = decoder_forward_ref_bf16(x, ref_params)   # same numerics as kernel
    ref_f32 = decoder_forward_ref_f32(x, ref_params)     # original f32 semantics
    assert jnp.allclose(out, ref_bf16, atol=1e-2, rtol=1e-2), float(
        jnp.max(jnp.abs(out - ref_bf16)))
    assert jnp.allclose(out, ref_f32, atol=5e-2, rtol=5e-2), float(
        jnp.max(jnp.abs(out - ref_f32)))

    print("KERNEL_OK")
</pallas_src>

<mosaic_0001>
module attributes {stable_mosaic.version = 11 : i64} {
  func.func @decoder_mlp_kernel(%arg0: i32, %arg1: i32, %arg2: memref<16x128xbf16, #tpu.memory_space<vmem>>, %arg3: memref<128x256xbf16, #tpu.memory_space<vmem>>, %arg4: memref<1x256xf32, #tpu.memory_space<vmem>>, %arg5: memref<256x512xbf16, #tpu.memory_space<vmem>>, %arg6: memref<1x512xf32, #tpu.memory_space<vmem>>, %arg7: memref<512x512xbf16, #tpu.memory_space<vmem>>, %arg8: memref<1x512xf32, #tpu.memory_space<vmem>>, %arg9: memref<512x128xbf16, #tpu.memory_space<vmem>>, %arg10: memref<1x128xf32, #tpu.memory_space<vmem>>, %arg11: memref<16x128xf32, #tpu.memory_space<vmem>>, %arg12: memref<16x512xf32, #tpu.memory_space<vmem>>) attributes {dimension_semantics = [#tpu.dimension_semantics<parallel>, #tpu.dimension_semantics<arbitrary>], iteration_bounds = array<i64: 1, 8>, scalar_prefetch = 0 : i64, scratch_operands = 1 : i64, tpu.core_type = #tpu.core_type<tc>, window_params = [{transform_indices = @transform_0, window_bounds = array<i64: 16, 128>}, {transform_indices = @transform_1, window_bounds = array<i64: 128, 256>}, {transform_indices = @transform_2, window_bounds = array<i64: 1, 256>}, {transform_indices = @transform_3, window_bounds = array<i64: 256, 512>}, {pipeline_mode = #tpu.pipeline_mode<synchronous>, transform_indices = @transform_4, window_bounds = array<i64: 1, 512>}, {pipeline_mode = #tpu.pipeline_mode<synchronous>, transform_indices = @transform_5, window_bounds = array<i64: 512, 512>}, {pipeline_mode = #tpu.pipeline_mode<synchronous>, transform_indices = @transform_6, window_bounds = array<i64: 1, 512>}, {pipeline_mode = #tpu.pipeline_mode<synchronous>, transform_indices = @transform_7, window_bounds = array<i64: 512, 128>}, {pipeline_mode = #tpu.pipeline_mode<synchronous>, transform_indices = @transform_8, window_bounds = array<i64: 1, 128>}, {transform_indices = @transform_9, window_bounds = array<i64: 16, 128>}]} {
    %c0_i32 = arith.constant 0 : i32
    %0 = arith.cmpi eq, %arg1, %c0_i32 : i32
    %1 = arith.extui %0 : i1 to i32
    %c0_i32_0 = arith.constant 0 : i32
    %2 = arith.cmpi ne, %1, %c0_i32_0 : i32
    scf.if %2 {
      %cst_15 = arith.constant 0.000000e+00 : f32
      %20 = vector.broadcast %cst_15 : f32 to vector<16x512xf32>
      %c0_16 = arith.constant 0 : index
      %c0_17 = arith.constant 0 : index
      %21 = vector.load %arg12[%c0_16, %c0_17] : memref<16x512xf32, #tpu.memory_space<vmem>>, vector<16x512xf32>
      tpu.vector_store %arg12[%c0_16, %c0_17], %20 {strides = array<i32>} : memref<16x512xf32, #tpu.memory_space<vmem>>, vector<16x512xf32>,
    } else {
    }
    %c0 = arith.constant 0 : index
    %c0_1 = arith.constant 0 : index
    %3 = vector.load %arg2[%c0, %c0_1] : memref<16x128xbf16, #tpu.memory_space<vmem>>, vector<16x128xbf16>
    %c0_2 = arith.constant 0 : index
    %c0_3 = arith.constant 0 : index
    %4 = vector.load %arg3[%c0_2, %c0_3] : memref<128x256xbf16, #tpu.memory_space<vmem>>, vector<128x256xbf16>
    %cst = arith.constant dense<0.000000e+00> : vector<16x256xf32>
    %5 = tpu.matmul %3, %4, %cst {dimension_numbers = #tpu.dot_dimension_numbers<[1], [0], [0], [1], [0, 0, 1, 1], [], []>} : vector<16x128xbf16>, vector<128x256xbf16>, vector<16x256xf32> -> vector<16x256xf32>
    %c0_4 = arith.constant 0 : index
    %c0_5 = arith.constant 0 : index
    %6 = vector.load %arg4[%c0_4, %c0_5] : memref<1x256xf32, #tpu.memory_space<vmem>>, vector<1x256xf32>
    %7 = vector.broadcast %6 : vector<1x256xf32> to vector<16x256xf32>
    %8 = arith.addf %5, %7 : vector<16x256xf32>
    %cst_6 = arith.constant 0.000000e+00 : f32
    %9 = vector.broadcast %cst_6 : f32 to vector<16x256xf32>
    %10 = arith.maximumf %8, %9 : vector<16x256xf32>
    %11 = arith.truncf %10 : vector<16x256xf32> to vector<16x256xbf16>
    %c0_7 = arith.constant 0 : index
    %c0_8 = arith.constant 0 : index
    %12 = vector.load %arg12[%c0_7, %c0_8] : memref<16x512xf32, #tpu.memory_space<vmem>>, vector<16x512xf32>
    %c0_9 = arith.constant 0 : index
    %c0_10 = arith.constant 0 : index
    %13 = vector.load %arg5[%c0_9, %c0_10] : memref<256x512xbf16, #tpu.memory_space<vmem>>, vector<256x512xbf16>
    %cst_11 = arith.constant dense<0.000000e+00> : vector<16x512xf32>
    %14 = tpu.matmul %11, %13, %cst_11 {dimension_numbers = #tpu.dot_dimension_numbers<[1], [0], [0], [1], [0, 0, 1, 1], [], []>} : vector<16x256xbf16>, vector<256x512xbf16>, vector<16x512xf32> -> vector<16x512xf32>
    %15 = arith.addf %12, %14 : vector<16x512xf32>
    %c0_12 = arith.constant 0 : index
    %c0_13 = arith.constant 0 : index
    %16 = vector.load %arg12[%c0_12, %c0_13] : memref<16x512xf32, #tpu.memory_space<vmem>>, vector<16x512xf32>
    tpu.vector_store %arg12[%c0_12, %c0_13], %15 {strides = array<i32>} : memref<16x512xf32, #tpu.memory_space<vmem>>, vector<16x512xf32>,
    %c7_i32 = arith.constant 7 : i32
    %17 = arith.cmpi eq, %arg1, %c7_i32 : i32
    %18 = arith.extui %17 : i1 to i32
    %c0_i32_14 = arith.constant 0 : i32
    %19 = arith.cmpi ne, %18, %c0_i32_14 : i32
    scf.if %19 {
      %c0_15 = arith.constant 0 : index
      %c0_16 = arith.constant 0 : index
      %20 = vector.load %arg12[%c0_15, %c0_16] : memref<16x512xf32, #tpu.memory_space<vmem>>, vector<16x512xf32>
      %c0_17 = arith.constant 0 : index
      %c0_18 = arith.constant 0 : index
      %21 = vector.load %arg6[%c0_17, %c0_18] : memref<1x512xf32, #tpu.memory_space<vmem>>, vector<1x512xf32>
      %22 = vector.broadcast %21 : vector<1x512xf32> to vector<16x512xf32>
      %23 = arith.addf %20, %22 : vector<16x512xf32>
      %cst_19 = arith.constant 0.000000e+00 : f32
      %24 = vector.broadcast %cst_19 : f32 to vector<16x512xf32>
      %25 = arith.maximumf %23, %24 : vector<16x512xf32>
      %26 = arith.truncf %25 : vector<16x512xf32> to vector<16x512xbf16>
      %c0_20 = arith.constant 0 : index
      %c0_21 = arith.constant 0 : index
      %27 = vector.load %arg7[%c0_20, %c0_21] : memref<512x512xbf16, #tpu.memory_space<vmem>>, vector<512x512xbf16>
      %cst_22 = arith.constant dense<0.000000e+00> : vector<16x512xf32>
      %28 = tpu.matmul %26, %27, %cst_22 {dimension_numbers = #tpu.dot_dimension_numbers<[1], [0], [0], [1], [0, 0, 1, 1], [], []>} : vector<16x512xbf16>, vector<512x512xbf16>, vector<16x512xf32> -> vector<16x512xf32>
      %c0_23 = arith.constant 0 : index
      %c0_24 = arith.constant 0 : index
      %29 = vector.load %arg8[%c0_23, %c0_24] : memref<1x512xf32, #tpu.memory_space<vmem>>, vector<1x512xf32>
      %30 = vector.broadcast %29 : vector<1x512xf32> to vector<16x512xf32>
      %31 = arith.addf %28, %30 : vector<16x512xf32>
      %cst_25 = arith.constant 0.000000e+00 : f32
      %32 = vector.broadcast %cst_25 : f32 to vector<16x512xf32>
      %33 = arith.maximumf %31, %32 : vector<16x512xf32>
      %34 = arith.truncf %33 : vector<16x512xf32> to vector<16x512xbf16>
      %c0_26 = arith.constant 0 : index
      %c0_27 = arith.constant 0 : index
      %35 = vector.load %arg9[%c0_26, %c0_27] : memref<512x128xbf16, #tpu.memory_space<vmem>>, vector<512x128xbf16>
      %cst_28 = arith.constant dense<0.000000e+00> : vector<16x128xf32>
      %36 = tpu.matmul %34, %35, %cst_28 {dimension_numbers = #tpu.dot_dimension_numbers<[1], [0], [0], [1], [0, 0, 1, 1], [], []>} : vector<16x512xbf16>, vector<512x128xbf16>, vector<16x128xf32> -> vector<16x128xf32>
      %c0_29 = arith.constant 0 : index
      %c0_30 = arith.constant 0 : index
      %37 = vector.load %arg10[%c0_29, %c0_30] : memref<1x128xf32, #tpu.memory_space<vmem>>, vector<1x128xf32>
      %38 = vector.broadcast %37 : vector<1x128xf32> to vector<16x128xf32>
      %39 = arith.addf %36, %38 : vector<16x128xf32>
      %c0_31 = arith.constant 0 : index
      %c0_32 = arith.constant 0 : index
      %40 = vector.load %arg11[%c0_31, %c0_32] : memref<16x128xf32, #tpu.memory_space<vmem>>, vector<16x128xf32>
      tpu.vector_store %arg11[%c0_31, %c0_32], %39 {strides = array<i32>} : memref<16x128xf32, #tpu.memory_space<vmem>>, vector<16x128xf32>,
    } else {
    }
    return
  }
  func.func @transform_0(%arg0: i32, %arg1: i32) -> (i32, i32) {
    %c0_i32 = arith.constant 0 : i32
    %c0_i32_0 = arith.constant 0 : i32
    return %arg0, %c0_i32 : i32, i32
  }
  func.func @transform_1(%arg0: i32, %arg1: i32) -> (i32, i32) {
    %c0_i32 = arith.constant 0 : i32
    %c0_i32_0 = arith.constant 0 : i32
    return %c0_i32, %arg1 : i32, i32
  }
  func.func @transform_2(%arg0: i32, %arg1: i32) -> (i32, i32) {
    %c0_i32 = arith.constant 0 : i32
    %c0_i32_0 = arith.constant 0 : i32
    return %c0_i32, %arg1 : i32, i32
  }
  func.func @transform_3(%arg0: i32, %arg1: i32) -> (i32, i32) {
    %c0_i32 = arith.constant 0 : i32
    %c0_i32_0 = arith.constant 0 : i32
    return %arg1, %c0_i32 : i32, i32
  }
  func.func @transform_4(%arg0: i32, %arg1: i32) -> (i32, i32) {
    %c0_i32 = arith.constant 0 : i32
    %c0_i32_0 = arith.constant 0 : i32
    %c0_i32_1 = arith.constant 0 : i32
    return %c0_i32, %c0_i32_0 : i32, i32
  }
  func.func @transform_5(%arg0: i32, %arg1: i32) -> (i32, i32) {
    %c0_i32 = arith.constant 0 : i32
    %c0_i32_0 = arith.constant 0 : i32
    %c0_i32_1 = arith.constant 0 : i32
    return %c0_i32, %c0_i32_0 : i32, i32
  }
  func.func @transform_6(%arg0: i32, %arg1: i32) -> (i32, i32) {
    %c0_i32 = arith.constant 0 : i32
    %c0_i32_0 = arith.constant 0 : i32
    %c0_i32_1 = arith.constant 0 : i32
    return %c0_i32, %c0_i32_0 : i32, i32
  }
  func.func @transform_7(%arg0: i32, %arg1: i32) -> (i32, i32) {
    %c0_i32 = arith.constant 0 : i32
    %c0_i32_0 = arith.constant 0 : i32
    %c0_i32_1 = arith.constant 0 : i32
    return %c0_i32, %c0_i32_0 : i32, i32
  }
  func.func @transform_8(%arg0: i32, %arg1: i32) -> (i32, i32) {
    %c0_i32 = arith.constant 0 : i32
    %c0_i32_0 = arith.constant 0 : i32
    %c0_i32_1 = arith.constant 0 : i32
    return %c0_i32, %c0_i32_0 : i32, i32
  }
  func.func @transform_9(%arg0: i32, %arg1: i32) -> (i32, i32) {
    %c0_i32 = arith.constant 0 : i32
    %c0_i32_0 = arith.constant 0 : i32
    return %arg0, %c0_i32 : i32, i32
  }
}

</mosaic_0001>

<llo_original>
// kernel: decoder_forward.1
$region0: #{decoder_forward.1}
  #allocation0 [shape = 'u32[]', space=smem, size = 0x4, offset = 0x4, fixed_abs, tag = 'smem constant byte address 0x4 - core index']
  #allocation1 [shape = 'u32[144,128]{1,0:T(1,128)}', space=vmem, size = 0x12000, scoped, tag = 'internal scratch']
  #allocation2 [shape = 'f32[16,512]{1,0:T(8,128)}', space=vmem, size = 0x8000, scoped, tag = 'scratch operand']
  %s0 = inlined_call_operand.vmem [shape: bf16[16,128], index: 0, kind: input, shape index: {}]
  %s1 = inlined_call_operand.hbm [shape: bf16[128,2048], index: 1, kind: input, shape index: {}]
  %s2 = inlined_call_operand.hbm [shape: f32[1,2048], index: 2, kind: input, shape index: {}]
  %s3 = inlined_call_operand.hbm [shape: bf16[2048,512], index: 3, kind: input, shape index: {}]
  %s4 = inlined_call_operand.hbm [shape: f32[1,512], index: 4, kind: input, shape index: {}]
  %s5 = inlined_call_operand.hbm [shape: bf16[512,512], index: 5, kind: input, shape index: {}]
  %s6 = inlined_call_operand.hbm [shape: f32[1,512], index: 6, kind: input, shape index: {}]
  %s7 = inlined_call_operand.hbm [shape: bf16[512,128], index: 7, kind: input, shape index: {}]
  %s8 = inlined_call_operand.hbm [shape: f32[1,128], index: 8, kind: input, shape index: {}]
  %s9 = inlined_call_operand.vmem [shape: f32[16,128], index: 9, kind: output, shape index: {}]
  %s10 = sld [smem:[#allocation0]]
  $region109: #{decoder_forward.1} parent=0
    _
  %s12 = ssub.s32 1, %s10
  %s13 = scalar_select 0, %s12, %s10
  $region1: #{decoder_forward.1} parent=0
    #allocation3 [shape = 'u8[131072]{0}', space=vmem, size = 0x20000, scoped, tag = 'input window, operand 1']
    #allocation4 [shape = 's32[2]{0}', space=sflag, size = 0x8, scoped, tag = 'scoped memory for decoder_forward.1']
    #allocation5 [shape = 'u8[2048]{0}', space=vmem, size = 0x800, scoped, tag = 'input window, operand 2']
    #allocation6 [shape = 's32[2]{0}', space=sflag, size = 0x8, scoped, tag = 'scoped memory for decoder_forward.1']
    #allocation7 [shape = 'u8[524288]{0}', space=vmem, size = 0x80000, scoped, tag = 'input window, operand 3']
    #allocation8 [shape = 'u8[2048]{0}', space=vmem, size = 0x800, scoped, tag = 'input window, operand 4, single buffered']
    #allocation9 [shape = 's32[1]{0}', space=sflag, size = 0x4, scoped, tag = 'scoped memory for decoder_forward.1']
    #allocation10 [shape = 'u8[524288]{0}', space=vmem, size = 0x80000, scoped, tag = 'input window, operand 5, single buffered']
    #allocation11 [shape = 'u8[2048]{0}', space=vmem, size = 0x800, scoped, tag = 'input window, operand 6, single buffered']
    #allocation12 [shape = 's32[1]{0}', space=sflag, size = 0x4, scoped, tag = 'scoped memory for decoder_forward.1']
    #allocation13 [shape = 'u8[131072]{0}', space=vmem, size = 0x20000, scoped, tag = 'input window, operand 7, single buffered']
    #allocation14 [shape = 'u8[512]{0}', space=vmem, size = 0x400, scoped, tag = 'input window, operand 8, single buffered']
    #allocation15 [shape = 's32[1]{0}', space=sflag, size = 0x4, scoped, tag = 'scoped memory for decoder_forward.1']
    %14 = vsyncpa [#allocation4], 0
    %s15 = scalar_lea.sflag [#allocation4], 1
    %16 = vsyncpa %s15, 0
    %17 = vsyncpa [#allocation6], 0
    %s18 = scalar_lea.sflag [#allocation6], 1
    %19 = vsyncpa %s18, 0
    %20 = vsyncpa [#allocation9], 0
    %21 = vsyncpa [#allocation12], 0
    %22 = vsyncpa [#allocation15], 0
    loop: start=0, step=1, limit=10
    $region2: #{decoder_forward.1} parent=1 // loop_pre_header
      _
    $region3: #{decoder_forward.1} parent=1 // loop_header
      %s24 = sphi 0, %s28
      %p25 = scmp.ge.s32.totalorder %s24, 10
      %s31 = sphi 0, %s43
      %s32 = sphi 0, %s39
      %s33 = sphi 0, %s31
      %s34 = sphi 0, %s32
      %s35 = sphi 0, %s33
      %s36 = sphi 0, %s34
      %s46 = sphi 0, %s48
      %s49 = sphi 0, %s46
      %s50 = sphi 0, %s49
      %s66 = sphi 0, %s50
      %s72 = sphi 0, %s74
      %s75 = sphi 0, %s72
      %s76 = sphi 0, %s75
      %s92 = sphi 0, %s76
      %s98 = sphi 0, %s100
      %s101 = sphi 0, %s98
      %s102 = sphi 0, %s101
      %s118 = sphi 0, %s102
      %s124 = sphi 0, %s126
      %s127 = sphi 0, %s124
      %s128 = sphi 0, %s127
      %s144 = sphi 0, %s128
      %s148 = sphi 0, %s148
      %s150 = sphi 0, %s148
      %s151 = sphi 0, %s150
      %s165 = sphi 0, %s151
      %s169 = sphi 0, %s169
      %s171 = sphi 0, %s169
      %s172 = sphi 0, %s171
      %s186 = sphi 0, %s172
      %s190 = sphi 0, %s190
      %s192 = sphi 0, %s190
      %s193 = sphi 0, %s192
      %s207 = sphi 0, %s193
      %s211 = sphi 0, %s211
      %s213 = sphi 0, %s211
      %s214 = sphi 0, %s213
      %s228 = sphi 0, %s214
      %s232 = sphi 0, %s232
      %s234 = sphi 0, %s232
      %s235 = sphi 0, %s234
      %s249 = sphi 0, %s235
      %s255 = sphi 0, %s257
      %s258 = sphi 0, %s255
      %s259 = sphi 0, %s258
      %s275 = sphi 0, %s259
    $region4: #{decoder_forward.1} parent=1 // loop_header_branch
      %27 = sbr.rel (%p25) target = $region8
    $region5: #{decoder_forward.1} parent=1 // loop_body
      %s29 = ssub.s32 %s24, 1
      %s30 = ssub.s32 %s24, 2
      %s37 = sadd.s32 1, %s32
      %p38 = scmp.ge.s32.totalorder %s37, 8
      %s39 = scalar_select %p38, 0, %s37
      %s40 = sadd.s32 1, %s31
      %s41 = scalar_select %p38, %s40, %s31
      %p42 = scmp.ge.s32.totalorder %s41, 1
      %s43 = scalar_select %p42, 0, %s41
      %s44 = ssub.s32 %s31, %s43
      %p45 = scmp.eq.s32.totalorder %s44, 0
      %s47 = sadd.s32 %s46, 1
      %s48 = scalar_select %p45, %s46, %s47
      %p51 = pneg %p45
      %p52 = scmp.eq.s32.totalorder %s24, 7
      %p53 = por %p51, %p52
      %p54 = scmp.ne.s32.totalorder %s46, %s49
      %p55 = scmp.eq.s32.totalorder %s24, 0
      %p56 = por %p54, %p55
      %p57 = scmp.ne.s32.totalorder %s46, %s49
      %p58 = scmp.eq.s32.totalorder %s29, 7
      %p59 = por %p57, %p58
      %p60 = scmp.ne.s32.totalorder %s49, %s50
      %p61 = scmp.eq.s32.totalorder %s29, 0
      %p62 = por %p60, %p61
      %p63 = scmp.ne.s32.totalorder %s49, %s50
      %p64 = scmp.eq.s32.totalorder %s30, 7
      %p65 = por %p63, %p64
      %p67 = scmp.ne.s32.totalorder %s50, %s66
      %p68 = scmp.eq.s32.totalorder %s30, 0
      %p69 = por %p67, %p68
      %s70 = ssub.s32 %s32, %s39
      %p71 = scmp.eq.s32.totalorder %s70, 0
      %s73 = sadd.s32 %s72, 1
      %s74 = scalar_select %p71, %s72, %s73
      %p77 = pneg %p71
      %p78 = scmp.eq.s32.totalorder %s24, 7
      %p79 = por %p77, %p78
      %p80 = scmp.ne.s32.totalorder %s72, %s75
      %p81 = scmp.eq.s32.totalorder %s24, 0
      %p82 = por %p80, %p81
      %p83 = scmp.ne.s32.totalorder %s72, %s75
      %p84 = scmp.eq.s32.totalorder %s29, 7
      %p85 = por %p83, %p84
      %p86 = scmp.ne.s32.totalorder %s75, %s76
      %p87 = scmp.eq.s32.totalorder %s29, 0
      %p88 = por %p86, %p87
      %p89 = scmp.ne.s32.totalorder %s75, %s76
      %p90 = scmp.eq.s32.totalorder %s30, 7
      %p91 = por %p89, %p90
      %p93 = scmp.ne.s32.totalorder %s76, %s92
      %p94 = scmp.eq.s32.totalorder %s30, 0
      %p95 = por %p93, %p94
      %s96 = ssub.s32 %s32, %s39
      %p97 = scmp.eq.s32.totalorder %s96, 0
      %s99 = sadd.s32 %s98, 1
      %s100 = scalar_select %p97, %s98, %s99
      %p103 = pneg %p97
      %p104 = scmp.eq.s32.totalorder %s24, 7
      %p105 = por %p103, %p104
      %p106 = scmp.ne.s32.totalorder %s98, %s101
      %p107 = scmp.eq.s32.totalorder %s24, 0
      %p108 = por %p106, %p107
      %p109 = scmp.ne.s32.totalorder %s98, %s101
      %p110 = scmp.eq.s32.totalorder %s29, 7
      %p111 = por %p109, %p110
      %p112 = scmp.ne.s32.totalorder %s101, %s102
      %p113 = scmp.eq.s32.totalorder %s29, 0
      %p114 = por %p112, %p113
      %p115 = scmp.ne.s32.totalorder %s101, %s102
      %p116 = scmp.eq.s32.totalorder %s30, 7
      %p117 = por %p115, %p116
      %p119 = scmp.ne.s32.totalorder %s102, %s118
      %p120 = scmp.eq.s32.totalorder %s30, 0
      %p121 = por %p119, %p120
      %s122 = ssub.s32 %s32, %s39
      %p123 = scmp.eq.s32.totalorder %s122, 0
      %s125 = sadd.s32 %s124, 1
      %s126 = scalar_select %p123, %s124, %s125
      %p129 = pneg %p123
      %p130 = scmp.eq.s32.totalorder %s24, 7
      %p131 = por %p129, %p130
      %p132 = scmp.ne.s32.totalorder %s124, %s127
      %p133 = scmp.eq.s32.totalorder %s24, 0
      %p134 = por %p132, %p133
      %p135 = scmp.ne.s32.totalorder %s124, %s127
      %p136 = scmp.eq.s32.totalorder %s29, 7
      %p137 = por %p135, %p136
      %p138 = scmp.ne.s32.totalorder %s127, %s128
      %p139 = scmp.eq.s32.totalorder %s29, 0
      %p140 = por %p138, %p139
      %p141 = scmp.ne.s32.totalorder %s127, %s128
      %p142 = scmp.eq.s32.totalorder %s30, 7
      %p143 = por %p141, %p142
      %p145 = scmp.ne.s32.totalorder %s128, %s144
      %p146 = scmp.eq.s32.totalorder %s30, 0
      %p147 = por %p145, %p146
      %s149 = sadd.s32 %s148, 1
      %p152 = scmp.eq.s32.totalorder %s24, 7
      %p153 = scmp.ne.s32.totalorder %s148, %s150
      %p154 = scmp.eq.s32.totalorder %s24, 0
      %p155 = por %p153, %p154
      %p156 = scmp.ne.s32.totalorder %s148, %s150
      %p157 = scmp.eq.s32.totalorder %s29, 7
      %p158 = por %p156, %p157
      %p159 = scmp.ne.s32.totalorder %s150, %s151
      %p160 = scmp.eq.s32.totalorder %s29, 0
      %p161 = por %p159, %p160
      %p162 = scmp.ne.s32.totalorder %s150, %s151
      %p163 = scmp.eq.s32.totalorder %s30, 7
      %p164 = por %p162, %p163
      %p166 = scmp.ne.s32.totalorder %s151, %s165
      %p167 = scmp.eq.s32.totalorder %s30, 0
      %p168 = por %p166, %p167
      %s170 = sadd.s32 %s169, 1
      %p173 = scmp.eq.s32.totalorder %s24, 7
      %p174 = scmp.ne.s32.totalorder %s169, %s171
      %p175 = scmp.eq.s32.totalorder %s24, 0
      %p176 = por %p174, %p175
      %p177 = scmp.ne.s32.totalorder %s169, %s171
      %p178 = scmp.eq.s32.totalorder %s29, 7
      %p179 = por %p177, %p178
      %p180 = scmp.ne.s32.totalorder %s171, %s172
      %p181 = scmp.eq.s32.totalorder %s29, 0
      %p182 = por %p180, %p181
      %p183 = scmp.ne.s32.totalorder %s171, %s172
      %p184 = scmp.eq.s32.totalorder %s30, 7
      %p185 = por %p183, %p184
      %p187 = scmp.ne.s32.totalorder %s172, %s186
      %p188 = scmp.eq.s32.totalorder %s30, 0
      %p189 = por %p187, %p188
      %s191 = sadd.s32 %s190, 1
      %p194 = scmp.eq.s32.totalorder %s24, 7
      %p195 = scmp.ne.s32.totalorder %s190, %s192
      %p196 = scmp.eq.s32.totalorder %s24, 0
      %p197 = por %p195, %p196
      %p198 = scmp.ne.s32.totalorder %s190, %s192
      %p199 = scmp.eq.s32.totalorder %s29, 7
      %p200 = por %p198, %p199
      %p201 = scmp.ne.s32.totalorder %s192, %s193
      %p202 = scmp.eq.s32.totalorder %s29, 0
      %p203 = por %p201, %p202
      %p204 = scmp.ne.s32.totalorder %s192, %s193
      %p205 = scmp.eq.s32.totalorder %s30, 7
      %p206 = por %p204, %p205
      %p208 = scmp.ne.s32.totalorder %s193, %s207
      %p209 = scmp.eq.s32.totalorder %s30, 0
      %p210 = por %p208, %p209
      %s212 = sadd.s32 %s211, 1
      %p215 = scmp.eq.s32.totalorder %s24, 7
      %p216 = scmp.ne.s32.totalorder %s211, %s213
      %p217 = scmp.eq.s32.totalorder %s24, 0
      %p218 = por %p216, %p217
      %p219 = scmp.ne.s32.totalorder %s211, %s213
      %p220 = scmp.eq.s32.totalorder %s29, 7
      %p221 = por %p219, %p220
      %p222 = scmp.ne.s32.totalorder %s213, %s214
      %p223 = scmp.eq.s32.totalorder %s29, 0
      %p224 = por %p222, %p223
      %p225 = scmp.ne.s32.totalorder %s213, %s214
      %p226 = scmp.eq.s32.totalorder %s30, 7
      %p227 = por %p225, %p226
      %p229 = scmp.ne.s32.totalorder %s214, %s228
      %p230 = scmp.eq.s32.totalorder %s30, 0
      %p231 = por %p229, %p230
      %s233 = sadd.s32 %s232, 1
      %p236 = scmp.eq.s32.totalorder %s24, 7
      %p237 = scmp.ne.s32.totalorder %s232, %s234
      %p238 = scmp.eq.s32.totalorder %s24, 0
      %p239 = por %p237, %p238
      %p240 = scmp.ne.s32.totalorder %s232, %s234
      %p241 = scmp.eq.s32.totalorder %s29, 7
      %p242 = por %p240, %p241
      %p243 = scmp.ne.s32.totalorder %s234, %s235
      %p244 = scmp.eq.s32.totalorder %s29, 0
      %p245 = por %p243, %p244
      %p246 = scmp.ne.s32.totalorder %s234, %s235
      %p247 = scmp.eq.s32.totalorder %s30, 7
      %p248 = por %p246, %p247
      %p250 = scmp.ne.s32.totalorder %s235, %s249
      %p251 = scmp.eq.s32.totalorder %s30, 0
      %p252 = por %p250, %p251
      %s253 = ssub.s32 %s31, %s43
      %p254 = scmp.eq.s32.totalorder %s253, 0
      %s256 = sadd.s32 %s255, 1
      %s257 = scalar_select %p254, %s255, %s256
      %p260 = pneg %p254
      %p261 = scmp.eq.s32.totalorder %s24, 7
      %p262 = por %p260, %p261
      %p263 = scmp.ne.s32.totalorder %s255, %s258
      %p264 = scmp.eq.s32.totalorder %s24, 0
      %p265 = por %p263, %p264
      %p266 = scmp.ne.s32.totalorder %s255, %s258
      %p267 = scmp.eq.s32.totalorder %s29, 7
      %p268 = por %p266, %p267
      %p269 = scmp.ne.s32.totalorder %s258, %s259
      %p270 = scmp.eq.s32.totalorder %s29, 0
      %p271 = por %p269, %p270
      %p272 = scmp.ne.s32.totalorder %s258, %s259
      %p273 = scmp.eq.s32.totalorder %s30, 7
      %p274 = por %p272, %p273
      %p276 = scmp.ne.s32.totalorder %s259, %s275
      %p277 = scmp.eq.s32.totalorder %s30, 0
      %p278 = por %p276, %p277
      %p279 = scmp.le.s32.totalorder 1, %s24
      %p280 = scmp.lt.s32.totalorder %s24, 9
      %p281 = pnand %p279, %p280
      %p282 = pneg %p281
      // Predicated region
      $region9: #{decoder_forward.1} parent=5 // pred_check
        _
      $region10: #{decoder_forward.1} parent=5 // pred_check_branch
        %284 = sbr.rel (%p281) target = $region12
      $region11: #{decoder_forward.1} parent=5 // pred_region
        %s285 = ssub.s32 %s24, 1
        // Predicated region
        $region13: #{decoder_forward.1} parent=11 // pred_check
          %p286 = pneg %p62
        $region14: #{decoder_forward.1} parent=11 // pred_check_branch
          %288 = sbr.rel (%p286) target = $region16
        $region15: #{decoder_forward.1} parent=11 // pred_region
          %s289 = smul.u32 2, %s33
          %p290 = scmp.lt.s32.totalorder %s289, 1
          %s291 = scalar_select %p290, %s289, 1
          %s292 = smul.addr %s291, 4
          %s293 = scalar_lea.vmem %s0, %s292
          %s294 = smul.u32 2, %s33
        $region16: #{decoder_forward.1} parent=11 // pred_fallthru
          _
        // Predicated region
        $region17: #{decoder_forward.1} parent=11 // pred_check
          %p295 = pneg %p161
        $region18: #{decoder_forward.1} parent=11 // pred_check_branch
          %297 = sbr.rel (%p295) target = $region20
        $region19: #{decoder_forward.1} parent=11 // pred_region
          %s299 = ssub.s32 64, 64
          %300 = vsyncadd [#allocation9], %s299
          %s302 = sshll.u32 [#allocation8], 4
          %s303 = int_to_ptr.vmem [resolvable:$true] %s302
          %305 = dma.hbm_to_vmem [thread:$0]  %s4, 64, %s303, [#allocation9]
        $region20: #{decoder_forward.1} parent=11 // pred_fallthru
          _
        // Predicated region
        $region21: #{decoder_forward.1} parent=11 // pred_check
          %p306 = pneg %p182
        $region22: #{decoder_forward.1} parent=11 // pred_check_branch
          %308 = sbr.rel (%p306) target = $region24
        $region23: #{decoder_forward.1} parent=11 // pred_region
          %s310 = ssub.s32 16384, 16384
          %311 = vsyncadd [#allocation9], %s310
          %s312 = sshll.u32 [#allocation10], 4
          %s313 = int_to_ptr.vmem [resolvable:$true] %s312
          %318 = dma.hbm_to_vmem [thread:$0]  %s5, 16384, %s313, [#allocation9], 256, 256, 16
        $region24: #{decoder_forward.1} parent=11 // pred_fallthru
          _
        // Predicated region
        $region25: #{decoder_forward.1} parent=11 // pred_check
          %p319 = pneg %p203
        $region26: #{decoder_forward.1} parent=11 // pred_check_branch
          %321 = sbr.rel (%p319) target = $region28
        $region27: #{decoder_forward.1} parent=11 // pred_region
          %s323 = ssub.s32 64, 64
          %324 = vsyncadd [#allocation12], %s323
          %s326 = sshll.u32 [#allocation11], 4
          %s327 = int_to_ptr.vmem [resolvable:$true] %s326
          %329 = dma.hbm_to_vmem [thread:$0]  %s6, 64, %s327, [#allocation12]
        $region28: #{decoder_forward.1} parent=11 // pred_fallthru
          _
        // Predicated region
        $region29: #{decoder_forward.1} parent=11 // pred_check
          %p330 = pneg %p224
        $region30: #{decoder_forward.1} parent=11 // pred_check_branch
          %332 = sbr.rel (%p330) target = $region32
        $region31: #{decoder_forward.1} parent=11 // pred_region
          %s334 = ssub.s32 4096, 4096
          %335 = vsyncadd [#allocation12], %s334
          %s336 = sshll.u32 [#allocation13], 4
          %s337 = int_to_ptr.vmem [resolvable:$true] %s336
          %342 = dma.hbm_to_vmem [thread:$0]  %s7, 4096, %s337, [#allocation12], 64, 64, 4
        $region32: #{decoder_forward.1} parent=11 // pred_fallthru
          _
        // Predicated region
        $region33: #{decoder_forward.1} parent=11 // pred_check
          %p343 = pneg %p245
        $region34: #{decoder_forward.1} parent=11 // pred_check_branch
          %345 = sbr.rel (%p343) target = $region36
        $region35: #{decoder_forward.1} parent=11 // pred_region
          %s347 = ssub.s32 16, 16
          %348 = vsyncadd [#allocation15], %s347
          %s350 = sshll.u32 [#allocation14], 4
          %s351 = int_to_ptr.vmem [resolvable:$true] %s350
          %353 = dma.hbm_to_vmem [thread:$0]  %s8, 16, %s351, [#allocation15]
        $region36: #{decoder_forward.1} parent=11 // pred_fallthru
          _
      $region12: #{decoder_forward.1} parent=5 // pred_fallthru
        _
      %p354 = scmp.lt.s32.totalorder %s24, 8
      // Predicated region
      $region37: #{decoder_forward.1} parent=5 // pred_check
        %p355 = pneg %p354
      $region38: #{decoder_forward.1} parent=5 // pred_check_branch
        %357 = sbr.rel (%p355) target = $region40
      $region39: #{decoder_forward.1} parent=5 // pred_region
        // Predicated region
        $region41: #{decoder_forward.1} parent=39 // pred_check
          %p358 = pneg %p82
        $region42: #{decoder_forward.1} parent=39 // pred_check_branch
          %360 = sbr.rel (%p358) target = $region44
        $region43: #{decoder_forward.1} parent=39 // pred_region
          %s361 = sand.u32 %s72, 1
          %s362 = scalar_lea.sflag [#allocation4], %s361
          %s363 = sand.u32 %s72, 1
          %s364 = smul.addr %s363, 128
          %s365 = scalar_lea.vmem [#allocation3], %s364
          %s366 = smul.u32 2, %s32
          %s368 = ssub.s32 2048, 2048
          %369 = vsyncadd %s362, %s368
          %s370 = smul.addr %s366, 64
          %s371 = scalar_lea.hbm %s1, %s370
          %s372 = sshll.u32 %s365, 4
          %s373 = int_to_ptr.vmem [resolvable:$true] %s372
          %378 = dma.hbm_to_vmem [thread:$0]  %s371, 2048, %s373, %s362, 1024, 128, 8
        $region44: #{decoder_forward.1} parent=39 // pred_fallthru
          _
        // Predicated region
        $region45: #{decoder_forward.1} parent=39 // pred_check
          %p379 = pneg %p108
        $region46: #{decoder_forward.1} parent=39 // pred_check_branch
          %381 = sbr.rel (%p379) target = $region48
        $region47: #{decoder_forward.1} parent=39 // pred_region
          %s382 = sand.u32 %s24, 1
          %s383 = scalar_lea.sflag [#allocation6], %s382
          %s384 = sand.u32 %s98, 1
          %s385 = smul.addr %s384, 2
          %s386 = scalar_lea.vmem [#allocation5], %s385
          %s387 = smul.u32 2, %s32
          %s389 = ssub.s32 32, 32
          %390 = vsyncadd %s383, %s389
          %s391 = smul.addr %s387, 16
          %s392 = scalar_lea.hbm %s2, %s391
          %s394 = sshll.u32 %s386, 4
          %s395 = int_to_ptr.vmem [resolvable:$true] %s394
          %397 = dma.hbm_to_vmem [thread:$0]  %s392, 32, %s395, %s383
        $region48: #{decoder_forward.1} parent=39 // pred_fallthru
          _
        // Predicated region
        $region49: #{decoder_forward.1} parent=39 // pred_check
          %p398 = pneg %p134
        $region50: #{decoder_forward.1} parent=39 // pred_check_branch
          %400 = sbr.rel (%p398) target = $region52
        $region51: #{decoder_forward.1} parent=39 // pred_region
          %s401 = sand.u32 %s24, 1
          %s402 = scalar_lea.sflag [#allocation6], %s401
          %s403 = sand.u32 %s124, 1
          %s404 = smul.addr %s403, 512
          %s405 = scalar_lea.vmem [#allocation7], %s404
          %s406 = smul.u32 32, %s32
          %s408 = ssub.s32 8192, 8192
          %409 = vsyncadd %s402, %s408
          %s410 = smul.addr %s406, 4
          %s411 = smul.addr %s410, 64
          %s412 = scalar_lea.hbm %s3, %s411
          %s413 = sshll.u32 %s405, 4
          %s414 = int_to_ptr.vmem [resolvable:$true] %s413
          %419 = dma.hbm_to_vmem [thread:$0]  %s412, 8192, %s414, %s402, 256, 256, 16
        $region52: #{decoder_forward.1} parent=39 // pred_fallthru
          _
      $region40: #{decoder_forward.1} parent=5 // pred_fallthru
        _
      %p420 = scmp.le.s32.totalorder 1, %s24
      %p421 = scmp.lt.s32.totalorder %s24, 9
      %p422 = pnand %p420, %p421
      %p423 = pneg %p422
      // Predicated region
      $region53: #{decoder_forward.1} parent=5 // pred_check
        _
      $region54: #{decoder_forward.1} parent=5 // pred_check_branch
        %425 = sbr.rel (%p422) target = $region56
      $region55: #{decoder_forward.1} parent=5 // pred_region
        %s426 = ssub.s32 %s24, 1
        %s427 = sand.u32 %s75, 1
        %s428 = scalar_lea.sflag [#allocation4], %s427
        %s429 = sand.u32 %s75, 1
        %s430 = smul.addr %s429, 128
        %s431 = scalar_lea.vmem [#allocation3], %s430
        // Predicated region
        $region57: #{decoder_forward.1} parent=55 // pred_check
          %p432 = pneg %p88
        $region58: #{decoder_forward.1} parent=55 // pred_check_branch
          %434 = sbr.rel (%p432) target = $region60
        $region59: #{decoder_forward.1} parent=55 // pred_region
          %435 = dma.done %s428, 2048
        $region60: #{decoder_forward.1} parent=55 // pred_fallthru
          _
        %s436 = sand.u32 %s29, 1
        %s437 = scalar_lea.sflag [#allocation6], %s436
        %s438 = sand.u32 %s101, 1
        %s439 = smul.addr %s438, 2
        %s440 = scalar_lea.vmem [#allocation5], %s439
        // Predicated region
        $region61: #{decoder_forward.1} parent=55 // pred_check
          %p441 = pneg %p114
        $region62: #{decoder_forward.1} parent=55 // pred_check_branch
          %443 = sbr.rel (%p441) target = $region64
        $region63: #{decoder_forward.1} parent=55 // pred_region
          %444 = dma.done %s437, 32
        $region64: #{decoder_forward.1} parent=55 // pred_fallthru
          _
        %s445 = sand.u32 %s29, 1
        %s446 = scalar_lea.sflag [#allocation6], %s445
        %s447 = sand.u32 %s127, 1
        %s448 = smul.addr %s447, 512
        %s449 = scalar_lea.vmem [#allocation7], %s448
        // Predicated region
        $region65: #{decoder_forward.1} parent=55 // pred_check
          %p450 = pneg %p140
        $region66: #{decoder_forward.1} parent=55 // pred_check_branch
          %452 = sbr.rel (%p450) target = $region68
        $region67: #{decoder_forward.1} parent=55 // pred_region
          %453 = dma.done %s446, 8192
        $region68: #{decoder_forward.1} parent=55 // pred_fallthru
          _
        // Predicated region
        $region69: #{decoder_forward.1} parent=55 // pred_check
          %p454 = pneg %p161
        $region70: #{decoder_forward.1} parent=55 // pred_check_branch
          %456 = sbr.rel (%p454) target = $region72
        $region71: #{decoder_forward.1} parent=55 // pred_region
          %457 = dma.done [#allocation9], 64
        $region72: #{decoder_forward.1} parent=55 // pred_fallthru
          _
        // Predicated region
        $region73: #{decoder_forward.1} parent=55 // pred_check
          %p458 = pneg %p182
        $region74: #{decoder_forward.1} parent=55 // pred_check_branch
          %460 = sbr.rel (%p458) target = $region76
        $region75: #{decoder_forward.1} parent=55 // pred_region
          %461 = dma.done [#allocation9], 16384
        $region76: #{decoder_forward.1} parent=55 // pred_fallthru
          _
        // Predicated region
        $region77: #{decoder_forward.1} parent=55 // pred_check
          %p462 = pneg %p203
        $region78: #{decoder_forward.1} parent=55 // pred_check_branch
          %464 = sbr.rel (%p462) target = $region80
        $region79: #{decoder_forward.1} parent=55 // pred_region
          %465 = dma.done [#allocation12], 64
        $region80: #{decoder_forward.1} parent=55 // pred_fallthru
          _
        // Predicated region
        $region81: #{decoder_forward.1} parent=55 // pred_check
          %p466 = pneg %p224
        $region82: #{decoder_forward.1} parent=55 // pred_check_branch
          %468 = sbr.rel (%p466) target = $region84
        $region83: #{decoder_forward.1} parent=55 // pred_region
          %469 = dma.done [#allocation12], 4096
        $region84: #{decoder_forward.1} parent=55 // pred_fallthru
          _
        // Predicated region
        $region85: #{decoder_forward.1} parent=55 // pred_check
          %p470 = pneg %p245
        $region86: #{decoder_forward.1} parent=55 // pred_check_branch
          %472 = sbr.rel (%p470) target = $region88
        $region87: #{decoder_forward.1} parent=55 // pred_region
          %473 = dma.done [#allocation15], 16
        $region88: #{decoder_forward.1} parent=55 // pred_fallthru
          _
        %s474 = smul.u32 2, %s33
        %p475 = scmp.lt.s32.totalorder %s474, 1
        %s476 = scalar_select %p475, %s474, 1
        %s477 = smul.addr %s476, 4
        %s478 = scalar_lea.vmem %s0, %s477
        %p479 = pneg %p62
        %p480 = pneg %p59
        %s481 = sand.u32 %s75, 1
        %s482 = scalar_lea.sflag [#allocation4], %s481
        %s483 = sand.u32 %s75, 1
        %s484 = smul.addr %s483, 128
        %s485 = scalar_lea.vmem [#allocation3], %s484
        %p486 = pneg %p88
        %p487 = pneg %p85
        %s488 = sand.u32 %s29, 1
        %s489 = scalar_lea.sflag [#allocation6], %s488
        %s490 = sand.u32 %s101, 1
        %s491 = smul.addr %s490, 2
        %s492 = scalar_lea.vmem [#allocation5], %s491
        %p493 = pneg %p114
        %p494 = pneg %p111
        %s495 = sand.u32 %s29, 1
        %s496 = scalar_lea.sflag [#allocation6], %s495
        %s497 = sand.u32 %s127, 1
        %s498 = smul.addr %s497, 512
        %s499 = scalar_lea.vmem [#allocation7], %s498
        %p500 = pneg %p140
        %p501 = pneg %p137
        %p502 = pneg %p161
        %p503 = pneg %p158
        %p504 = pneg %p182
        %p505 = pneg %p179
        %p506 = pneg %p203
        %p507 = pneg %p200
        %p508 = pneg %p224
        %p509 = pneg %p221
        %p510 = pneg %p245
        %p511 = pneg %p242
        %p512 = pneg %p271
        %p513 = pneg %p268
        %s514 = smul.u32 2, %s33
        %p515 = scmp.lt.s32.totalorder %s514, 1
        %s516 = scalar_select %p515, %s514, 1
        %s517 = smul.addr %s516, 8
        %s518 = scalar_lea.vmem %s9, %s517
        %s519 = smul.u32 2, %s33
        %p520 = scmp.lt.s32.totalorder %s519, 1
        %s521 = scalar_select %p520, %s519, 1
        %s522 = smul.addr %s521, 4
        %s523 = scalar_lea.vmem %s0, %s522
        %s524 = smul.u32 2, %s33
        %s525 = smul.u32 2, %s34
        %s526 = smul.u32 2, %s34
        %s527 = smul.u32 32, %s34
        %s528 = smul.u32 2, %s33
        %p529 = scmp.lt.s32.totalorder %s528, 1
        %s530 = scalar_select %p529, %s528, 1
        %s531 = smul.addr %s530, 8
        %s532 = scalar_lea.vmem %s9, %s531
        %s533 = smul.u32 2, %s33
        %p535 = scmp.eq.s32.totalorder %s34, 0
        // Predicated region
        $region89: #{decoder_forward.1} parent=55 // pred_check
          %p536 = pneg %p535
        $region90: #{decoder_forward.1} parent=55 // pred_check_branch
          %538 = sbr.rel (%p536) target = $region92
        $region91: #{decoder_forward.1} parent=55 // pred_region
          %539 = vst [vmem:[#allocation2] sm:$0xff] 0.0
          %540 = vst [vmem:[#allocation2 + $0x8] sm:$0xff] 0.0
          %541 = vst [vmem:[#allocation2 + $0x10] sm:$0xff] 0.0
          %542 = vst [vmem:[#allocation2 + $0x18] sm:$0xff] 0.0
          %543 = vst [vmem:[#allocation2 + $0x20] sm:$0xff] 0.0
          %544 = vst [vmem:[#allocation2 + $0x28] sm:$0xff] 0.0
          %545 = vst [vmem:[#allocation2 + $0x30] sm:$0xff] 0.0
          %546 = vst [vmem:[#allocation2 + $0x38] sm:$0xff] 0.0
        $region92: #{decoder_forward.1} parent=55 // pred_fallthru
          _
        %v547 = vld [vmem:[%s523] sm:$0xf]
        %v548 = vld [vmem:[%s523 + $0x4] sm:$0xf]
        %v549 = vld [vmem:[%s431] sm:$0xff]
        %v550 = vld [vmem:[%s431 + $0x8] sm:$0xff]
        %v551 = vld [vmem:[%s431 + $0x10] sm:$0xff]
        %v552 = vld [vmem:[%s431 + $0x18] sm:$0xff]
        %v553 = vld [vmem:[%s431 + $0x20] sm:$0xff]
        %v554 = vld [vmem:[%s431 + $0x28] sm:$0xff]
        %v555 = vld [vmem:[%s431 + $0x30] sm:$0xff]
        %v556 = vld [vmem:[%s431 + $0x38] sm:$0xff]
        %v557 = vld [vmem:[%s431 + $0x40] sm:$0xff]
        %v558 = vld [vmem:[%s431 + $0x48] sm:$0xff]
        %v559 = vld [vmem:[%s431 + $0x50] sm:$0xff]
        %v560 = vld [vmem:[%s431 + $0x58] sm:$0xff]
        %v561 = vld [vmem:[%s431 + $0x60] sm:$0xff]
        %v562 = vld [vmem:[%s431 + $0x68] sm:$0xff]
        %v563 = vld [vmem:[%s431 + $0x70] sm:$0xff]
        %v564 = vld [vmem:[%s431 + $0x78] sm:$0xff]
        %v565 = vld [vmem:[%s440] sm:$0x3]
        %v567 = vlaneseq
        %v568 = vshrl.u32 %v567, 7
        %v569 = vsub.s32 0, %v568
        %v570 = vrot.slane %v565, %v569
        %v571 = vlaneseq
        %v572 = vshrl.u32 %v571, 7
        %v573 = vsub.s32 1, %v572
        %v574 = vrot.slane %v565, %v573
        %v579 = vunpack.c.l.b16 %v547
        %v580 = vunpack.c.l.b16 %v548
        %v581 = vpack.c.b16 %v580, %v579
        %v599 = vunpack.c.l.b16 %v549
        %v600 = vunpack.c.h.b16 %v549
        %v601 = vunpack.c.l.b16 %v550
        %v602 = vunpack.c.h.b16 %v550
        %v603 = vunpack.c.l.b16 %v551
        %v604 = vunpack.c.h.b16 %v551
        %v605 = vunpack.c.l.b16 %v552
        %v606 = vunpack.c.h.b16 %v552
        %v607 = vunpack.c.l.b16 %v553
        %v608 = vunpack.c.h.b16 %v553
        %v609 = vunpack.c.l.b16 %v554
        %v610 = vunpack.c.h.b16 %v554
        %v611 = vunpack.c.l.b16 %v555
        %v612 = vunpack.c.h.b16 %v555
        %v613 = vunpack.c.l.b16 %v556
        %v614 = vunpack.c.h.b16 %v556
        %v615 = vunpack.c.l.b16 %v557
        %v616 = vunpack.c.h.b16 %v557
        %v617 = vunpack.c.l.b16 %v558
        %v618 = vunpack.c.h.b16 %v558
        %v619 = vunpack.c.l.b16 %v559
        %v620 = vunpack.c.h.b16 %v559
        %v621 = vunpack.c.l.b16 %v560
        %v622 = vunpack.c.h.b16 %v560
        %v623 = vunpack.c.l.b16 %v561
        %v624 = vunpack.c.h.b16 %v561
        %v625 = vunpack.c.l.b16 %v562
        %v626 = vunpack.c.h.b16 %v562
        %v627 = vunpack.c.l.b16 %v563
        %v628 = vunpack.c.h.b16 %v563
        %v629 = vunpack.c.l.b16 %v564
        %v630 = vunpack.c.h.b16 %v564
        %v631 = vpack.c.b16 %v601, %v599
        %v632 = vpack.c.b16 %v602, %v600
        %v633 = vpack.c.b16 %v605, %v603
        %v634 = vpack.c.b16 %v606, %v604
        %v635 = vpack.c.b16 %v609, %v607
        %v636 = vpack.c.b16 %v610, %v608
        %v637 = vpack.c.b16 %v613, %v611
        %v638 = vpack.c.b16 %v614, %v612
        %v639 = vpack.c.b16 %v617, %v615
        %v640 = vpack.c.b16 %v618, %v616
        %v641 = vpack.c.b16 %v621, %v619
        %v642 = vpack.c.b16 %v622, %v620
        %v643 = vpack.c.b16 %v625, %v623
        %v644 = vpack.c.b16 %v626, %v624
        %v645 = vpack.c.b16 %v629, %v627
        %v646 = vpack.c.b16 %v630, %v628
        %663 = vmatprep.subr.bf16.mxu0 %v632
        %664 = vmatpush1.bf16.msra.mxu0 %v631
        %665 = vmatprep.subr.bf16.mxu0 %v634
        %666 = vmatpush1.bf16.msra.mxu0 %v633
        %667 = vmatprep.subr.bf16.mxu0 %v636
        %668 = vmatpush1.bf16.msra.mxu0 %v635
        %669 = vmatprep.subr.bf16.mxu0 %v638
        %670 = vmatpush1.bf16.msra.mxu0 %v637
        %671 = vmatprep.subr.bf16.mxu0 %v640
        %672 = vmatpush1.bf16.msra.mxu0 %v639
        %673 = vmatprep.subr.bf16.mxu0 %v642
        %674 = vmatpush1.bf16.msra.mxu0 %v641
        %675 = vmatprep.subr.bf16.mxu0 %v644
        %676 = vmatpush1.bf16.msra.mxu0 %v643
        %677 = vmatprep.subr.bf16.mxu0 %v646
        %678 = vmatpush1.bf16.msra.mxu0 %v645
        %679 = vmatprep.subr.bf16.mxu0 0
        %680 = vmatpush1.bf16.msra.mxu0 0
        %681 = vmatprep.subr.bf16.mxu0 0
        %682 = vmatpush1.bf16.msra.mxu0 0
        %683 = vmatprep.subr.bf16.mxu0 0
        %684 = vmatpush1.bf16.msra.mxu0 0
        %685 = vmatprep.subr.bf16.mxu0 0
        %686 = vmatpush1.bf16.msra.mxu0 0
        %687 = vmatprep.subr.bf16.mxu0 0
        %688 = vmatpush1.bf16.msra.mxu0 0
        %689 = vmatprep.subr.bf16.mxu0 0
        %690 = vmatpush1.bf16.msra.mxu0 0
        %691 = vmatprep.subr.bf16.mxu0 0
        %692 = vmatpush1.bf16.msra.mxu0 0
        %693 = vmatprep.subr.bf16.mxu0 0
        %694 = vmatpush1.bf16.msra.mxu0 0
        %695 = vmatprep.mubr.bf16.mxu0 0
        %696 = vmatmul.mubr.bf16.gmra.mrb[0].mxu0 %v581
        %v697 = vpop.f32.mrb[0].mxu0
        %v698 = vadd.f32 %v570, %v697
        %v699 = vpop.f32.mrb[0].mxu0
        %v700 = vadd.f32 %v574, %v699
        %v701 = vpop.f32.mrb[0].mxu0
        %v702 = vadd.f32 %v570, %v701
        %v703 = vpop.f32.mrb[0].mxu0
        %v704 = vadd.f32 %v574, %v703
        %705 = vdwg.mxu0
        %v706 = vmax.f32 %v698, 0.0
        %v707 = vmax.f32 %v700, 0.0
        %v708 = vmax.f32 %v702, 0.0
        %v709 = vmax.f32 %v704, 0.0
        %v710 = vpack.c.bf16 %v708, %v706
        %v711 = vpack.c.bf16 %v709, %v707
        %v712 = vld [vmem:[#allocation2] sm:$0xff]
        %v713 = vld [vmem:[#allocation2 + $0x8] sm:$0xff]
        %v714 = vld [vmem:[#allocation2 + $0x10] sm:$0xff]
        %v715 = vld [vmem:[#allocation2 + $0x18] sm:$0xff]
        %v716 = vld [vmem:[#allocation2 + $0x20] sm:$0xff]
        %v717 = vld [vmem:[#allocation2 + $0x28] sm:$0xff]
        %v718 = vld [vmem:[#allocation2 + $0x30] sm:$0xff]
        %v719 = vld [vmem:[#allocation2 + $0x38] sm:$0xff]
        %v720 = vld [vmem:[%s449] sm:$0xff]
        %v721 = vld [vmem:[%s449 + $0x8] sm:$0xff]
        %v722 = vld [vmem:[%s449 + $0x10] sm:$0xff]
        %v723 = vld [vmem:[%s449 + $0x18] sm:$0xff]
        %v724 = vld [vmem:[%s449 + $0x20] sm:$0xff]
        %v725 = vld [vmem:[%s449 + $0x28] sm:$0xff]
        %v726 = vld [vmem:[%s449 + $0x30] sm:$0xff]
        %v727 = vld [vmem:[%s449 + $0x38] sm:$0xff]
        %v728 = vld [vmem:[%s449 + $0x40] sm:$0xff]
        %v729 = vld [vmem:[%s449 + $0x48] sm:$0xff]
        %v730 = vld [vmem:[%s449 + $0x50] sm:$0xff]
        %v731 = vld [vmem:[%s449 + $0x58] sm:$0xff]
        %v732 = vld [vmem:[%s449 + $0x60] sm:$0xff]
        %v733 = vld [vmem:[%s449 + $0x68] sm:$0xff]
        %v734 = vld [vmem:[%s449 + $0x70] sm:$0xff]
        %v735 = vld [vmem:[%s449 + $0x78] sm:$0xff]
        %v736 = vld [vmem:[%s449 + $0x80] sm:$0xff]
        %v737 = vld [vmem:[%s449 + $0x88] sm:$0xff]
        %v738 = vld [vmem:[%s449 + $0x90] sm:$0xff]
        %v739 = vld [vmem:[%s449 + $0x98] sm:$0xff]
        %v740 = vld [vmem:[%s449 + $0xa0] sm:$0xff]
        %v741 = vld [vmem:[%s449 + $0xa8] sm:$0xff]
        %v742 = vld [vmem:[%s449 + $0xb0] sm:$0xff]
        %v743 = vld [vmem:[%s449 + $0xb8] sm:$0xff]
        %v744 = vld [vmem:[%s449 + $0xc0] sm:$0xff]
        %v745 = vld [vmem:[%s449 + $0xc8] sm:$0xff]
        %v746 = vld [vmem:[%s449 + $0xd0] sm:$0xff]
        %v747 = vld [vmem:[%s449 + $0xd8] sm:$0xff]
        %v748 = vld [vmem:[%s449 + $0xe0] sm:$0xff]
        %v749 = vld [vmem:[%s449 + $0xe8] sm:$0xff]
        %v750 = vld [vmem:[%s449 + $0xf0] sm:$0xff]
        %v751 = vld [vmem:[%s449 + $0xf8] sm:$0xff]
        %v752 = vld [vmem:[%s449 + $0x100] sm:$0xff]
        %v753 = vld [vmem:[%s449 + $0x108] sm:$0xff]
        %v754 = vld [vmem:[%s449 + $0x110] sm:$0xff]
        %v755 = vld [vmem:[%s449 + $0x118] sm:$0xff]
        %v756 = vld [vmem:[%s449 + $0x120] sm:$0xff]
        %v757 = vld [vmem:[%s449 + $0x128] sm:$0xff]
        %v758 = vld [vmem:[%s449 + $0x130] sm:$0xff]
        %v759 = vld [vmem:[%s449 + $0x138] sm:$0xff]
        %v760 = vld [vmem:[%s449 + $0x140] sm:$0xff]
        %v761 = vld [vmem:[%s449 + $0x148] sm:$0xff]
        %v762 = vld [vmem:[%s449 + $0x150] sm:$0xff]
        %v763 = vld [vmem:[%s449 + $0x158] sm:$0xff]
        %v764 = vld [vmem:[%s449 + $0x160] sm:$0xff]
        %v765 = vld [vmem:[%s449 + $0x168] sm:$0xff]
        %v766 = vld [vmem:[%s449 + $0x170] sm:$0xff]
        %v767 = vld [vmem:[%s449 + $0x178] sm:$0xff]
        %v768 = vld [vmem:[%s449 + $0x180] sm:$0xff]
        %v769 = vld [vmem:[%s449 + $0x188] sm:$0xff]
        %v770 = vld [vmem:[%s449 + $0x190] sm:$0xff]
        %v771 = vld [vmem:[%s449 + $0x198] sm:$0xff]
        %v772 = vld [vmem:[%s449 + $0x1a0] sm:$0xff]
        %v773 = vld [vmem:[%s449 + $0x1a8] sm:$0xff]
        %v774 = vld [vmem:[%s449 + $0x1b0] sm:$0xff]
        %v775 = vld [vmem:[%s449 + $0x1b8] sm:$0xff]
        %v776 = vld [vmem:[%s449 + $0x1c0] sm:$0xff]
        %v777 = vld [vmem:[%s449 + $0x1c8] sm:$0xff]
        %v778 = vld [vmem:[%s449 + $0x1d0] sm:$0xff]
        %v779 = vld [vmem:[%s449 + $0x1d8] sm:$0xff]
        %v780 = vld [vmem:[%s449 + $0x1e0] sm:$0xff]
        %v781 = vld [vmem:[%s449 + $0x1e8] sm:$0xff]
        %v782 = vld [vmem:[%s449 + $0x1f0] sm:$0xff]
        %v783 = vld [vmem:[%s449 + $0x1f8] sm:$0xff]
        %v848 = vunpack.c.l.b16 %v720
        %v849 = vunpack.c.h.b16 %v720
        %v850 = vunpack.c.l.b16 %v721
        %v851 = vunpack.c.h.b16 %v721
        %v852 = vunpack.c.l.b16 %v722
        %v853 = vunpack.c.h.b16 %v722
        %v854 = vunpack.c.l.b16 %v723
        %v855 = vunpack.c.h.b16 %v723
        %v856 = vunpack.c.l.b16 %v724
        %v857 = vunpack.c.h.b16 %v724
        %v858 = vunpack.c.l.b16 %v725
        %v859 = vunpack.c.h.b16 %v725
        %v860 = vunpack.c.l.b16 %v726
        %v861 = vunpack.c.h.b16 %v726
        %v862 = vunpack.c.l.b16 %v727
        %v863 = vunpack.c.h.b16 %v727
        %v864 = vunpack.c.l.b16 %v728
        %v865 = vunpack.c.h.b16 %v728
        %v866 = vunpack.c.l.b16 %v729
        %v867 = vunpack.c.h.b16 %v729
        %v868 = vunpack.c.l.b16 %v730
        %v869 = vunpack.c.h.b16 %v730
        %v870 = vunpack.c.l.b16 %v731
        %v871 = vunpack.c.h.b16 %v731
        %v872 = vunpack.c.l.b16 %v732
        %v873 = vunpack.c.h.b16 %v732
        %v874 = vunpack.c.l.b16 %v733
        %v875 = vunpack.c.h.b16 %v733
        %v876 = vunpack.c.l.b16 %v734
        %v877 = vunpack.c.h.b16 %v734
        %v878 = vunpack.c.l.b16 %v735
        %v879 = vunpack.c.h.b16 %v735
        %v880 = vunpack.c.l.b16 %v736
        %v881 = vunpack.c.h.b16 %v736
        %v882 = vunpack.c.l.b16 %v737
        %v883 = vunpack.c.h.b16 %v737
        %v884 = vunpack.c.l.b16 %v738
        %v885 = vunpack.c.h.b16 %v738
        %v886 = vunpack.c.l.b16 %v739
        %v887 = vunpack.c.h.b16 %v739
        %v888 = vunpack.c.l.b16 %v740
        %v889 = vunpack.c.h.b16 %v740
        %v890 = vunpack.c.l.b16 %v741
        %v891 = vunpack.c.h.b16 %v741
        %v892 = vunpack.c.l.b16 %v742
        %v893 = vunpack.c.h.b16 %v742
        %v894 = vunpack.c.l.b16 %v743
        %v895 = vunpack.c.h.b16 %v743
        %v896 = vunpack.c.l.b16 %v744
        %v897 = vunpack.c.h.b16 %v744
        %v898 = vunpack.c.l.b16 %v745
        %v899 = vunpack.c.h.b16 %v745
        %v900 = vunpack.c.l.b16 %v746
        %v901 = vunpack.c.h.b16 %v746
        %v902 = vunpack.c.l.b16 %v747
        %v903 = vunpack.c.h.b16 %v747
        %v904 = vunpack.c.l.b16 %v748
        %v905 = vunpack.c.h.b16 %v748
        %v906 = vunpack.c.l.b16 %v749
        %v907 = vunpack.c.h.b16 %v749
        %v908 = vunpack.c.l.b16 %v750
        %v909 = vunpack.c.h.b16 %v750
        %v910 = vunpack.c.l.b16 %v751
        %v911 = vunpack.c.h.b16 %v751
        %v912 = vunpack.c.l.b16 %v752
        %v913 = vunpack.c.h.b16 %v752
        %v914 = vunpack.c.l.b16 %v753
        %v915 = vunpack.c.h.b16 %v753
        %v916 = vunpack.c.l.b16 %v754
        %v917 = vunpack.c.h.b16 %v754
        %v918 = vunpack.c.l.b16 %v755
        %v919 = vunpack.c.h.b16 %v755
        %v920 = vunpack.c.l.b16 %v756
        %v921 = vunpack.c.h.b16 %v756
        %v922 = vunpack.c.l.b16 %v757
        %v923 = vunpack.c.h.b16 %v757
        %v924 = vunpack.c.l.b16 %v758
        %v925 = vunpack.c.h.b16 %v758
        %v926 = vunpack.c.l.b16 %v759
        %v927 = vunpack.c.h.b16 %v759
        %v928 = vunpack.c.l.b16 %v760
        %v929 = vunpack.c.h.b16 %v760
        %v930 = vunpack.c.l.b16 %v761
        %v931 = vunpack.c.h.b16 %v761
        %v932 = vunpack.c.l.b16 %v762
        %v933 = vunpack.c.h.b16 %v762
        %v934 = vunpack.c.l.b16 %v763
        %v935 = vunpack.c.h.b16 %v763
        %v936 = vunpack.c.l.b16 %v764
        %v937 = vunpack.c.h.b16 %v764
        %v938 = vunpack.c.l.b16 %v765
        %v939 = vunpack.c.h.b16 %v765
        %v940 = vunpack.c.l.b16 %v766
        %v941 = vunpack.c.h.b16 %v766
        %v942 = vunpack.c.l.b16 %v767
        %v943 = vunpack.c.h.b16 %v767
        %v944 = vunpack.c.l.b16 %v768
        %v945 = vunpack.c.h.b16 %v768
        %v946 = vunpack.c.l.b16 %v769
        %v947 = vunpack.c.h.b16 %v769
        %v948 = vunpack.c.l.b16 %v770
        %v949 = vunpack.c.h.b16 %v770
        %v950 = vunpack.c.l.b16 %v771
        %v951 = vunpack.c.h.b16 %v771
        %v952 = vunpack.c.l.b16 %v772
        %v953 = vunpack.c.h.b16 %v772
        %v954 = vunpack.c.l.b16 %v773
        %v955 = vunpack.c.h.b16 %v773
        %v956 = vunpack.c.l.b16 %v774
        %v957 = vunpack.c.h.b16 %v774
        %v958 = vunpack.c.l.b16 %v775
        %v959 = vunpack.c.h.b16 %v775
        %v960 = vunpack.c.l.b16 %v776
        %v961 = vunpack.c.h.b16 %v776
        %v962 = vunpack.c.l.b16 %v777
        %v963 = vunpack.c.h.b16 %v777
        %v964 = vunpack.c.l.b16 %v778
        %v965 = vunpack.c.h.b16 %v778
        %v966 = vunpack.c.l.b16 %v779
        %v967 = vunpack.c.h.b16 %v779
        %v968 = vunpack.c.l.b16 %v780
        %v969 = vunpack.c.h.b16 %v780
        %v970 = vunpack.c.l.b16 %v781
        %v971 = vunpack.c.h.b16 %v781
        %v972 = vunpack.c.l.b16 %v782
        %v973 = vunpack.c.h.b16 %v782
        %v974 = vunpack.c.l.b16 %v783
        %v975 = vunpack.c.h.b16 %v783
        %v976 = vpack.c.b16 %v852, %v848
        %v977 = vpack.c.b16 %v853, %v849
        %v978 = vpack.c.b16 %v854, %v850
        %v979 = vpack.c.b16 %v855, %v851
        %v980 = vpack.c.b16 %v860, %v856
        %v981 = vpack.c.b16 %v861, %v857
        %v982 = vpack.c.b16 %v862, %v858
        %v983 = vpack.c.b16 %v863, %v859
        %v984 = vpack.c.b16 %v868, %v864
        %v985 = vpack.c.b16 %v869, %v865
        %v986 = vpack.c.b16 %v870, %v866
        %v987 = vpack.c.b16 %v871, %v867
        %v988 = vpack.c.b16 %v876, %v872
        %v989 = vpack.c.b16 %v877, %v873
        %v990 = vpack.c.b16 %v878, %v874
        %v991 = vpack.c.b16 %v879, %v875
        %v992 = vpack.c.b16 %v884, %v880
        %v993 = vpack.c.b16 %v885, %v881
        %v994 = vpack.c.b16 %v886, %v882
        %v995 = vpack.c.b16 %v887, %v883
        %v996 = vpack.c.b16 %v892, %v888
        %v997 = vpack.c.b16 %v893, %v889
        %v998 = vpack.c.b16 %v894, %v890
        %v999 = vpack.c.b16 %v895, %v891
        %v1000 = vpack.c.b16 %v900, %v896
        %v1001 = vpack.c.b16 %v901, %v897
        %v1002 = vpack.c.b16 %v902, %v898
        %v1003 = vpack.c.b16 %v903, %v899
        %v1004 = vpack.c.b16 %v908, %v904
        %v1005 = vpack.c.b16 %v909, %v905
        %v1006 = vpack.c.b16 %v910, %v906
        %v1007 = vpack.c.b16 %v911, %v907
        %v1008 = vpack.c.b16 %v916, %v912
        %v1009 = vpack.c.b16 %v917, %v913
        %v1010 = vpack.c.b16 %v918, %v914
        %v1011 = vpack.c.b16 %v919, %v915
        %v1012 = vpack.c.b16 %v924, %v920
        %v1013 = vpack.c.b16 %v925, %v921
        %v1014 = vpack.c.b16 %v926, %v922
        %v1015 = vpack.c.b16 %v927, %v923
        %v1016 = vpack.c.b16 %v932, %v928
        %v1017 = vpack.c.b16 %v933, %v929
        %v1018 = vpack.c.b16 %v934, %v930
        %v1019 = vpack.c.b16 %v935, %v931
        %v1020 = vpack.c.b16 %v940, %v936
        %v1021 = vpack.c.b16 %v941, %v937
        %v1022 = vpack.c.b16 %v942, %v938
        %v1023 = vpack.c.b16 %v943, %v939
        %v1024 = vpack.c.b16 %v948, %v944
        %v1025 = vpack.c.b16 %v949, %v945
        %v1026 = vpack.c.b16 %v950, %v946
        %v1027 = vpack.c.b16 %v951, %v947
        %v1028 = vpack.c.b16 %v956, %v952
        %v1029 = vpack.c.b16 %v957, %v953
        %v1030 = vpack.c.b16 %v958, %v954
        %v1031 = vpack.c.b16 %v959, %v955
        %v1032 = vpack.c.b16 %v964, %v960
        %v1033 = vpack.c.b16 %v965, %v961
        %v1034 = vpack.c.b16 %v966, %v962
        %v1035 = vpack.c.b16 %v967, %v963
        %v1036 = vpack.c.b16 %v972, %v968
        %v1037 = vpack.c.b16 %v973, %v969
        %v1038 = vpack.c.b16 %v974, %v970
        %v1039 = vpack.c.b16 %v975, %v971
        %1104 = vmatprep.subr.bf16.mxu0 %v977
        %1105 = vmatpush1.bf16.msra.mxu0 %v976
        %1106 = vmatprep.subr.bf16.mxu0 %v981
        %1107 = vmatpush1.bf16.msra.mxu0 %v980
        %1108 = vmatprep.subr.bf16.mxu0 %v985
        %1109 = vmatpush1.bf16.msra.mxu0 %v984
        %1110 = vmatprep.subr.bf16.mxu0 %v989
        %1111 = vmatpush1.bf16.msra.mxu0 %v988
        %1112 = vmatprep.subr.bf16.mxu0 %v993
        %1113 = vmatpush1.bf16.msra.mxu0 %v992
        %1114 = vmatprep.subr.bf16.mxu0 %v997
        %1115 = vmatpush1.bf16.msra.mxu0 %v996
        %1116 = vmatprep.subr.bf16.mxu0 %v1001
        %1117 = vmatpush1.bf16.msra.mxu0 %v1000
        %1118 = vmatprep.subr.bf16.mxu0 %v1005
        %1119 = vmatpush1.bf16.msra.mxu0 %v1004
        %1120 = vmatprep.subr.bf16.mxu0 %v1009
        %1121 = vmatpush1.bf16.msra.mxu0 %v1008
        %1122 = vmatprep.subr.bf16.mxu0 %v1013
        %1123 = vmatpush1.bf16.msra.mxu0 %v1012
        %1124 = vmatprep.subr.bf16.mxu0 %v1017
        %1125 = vmatpush1.bf16.msra.mxu0 %v1016
        %1126 = vmatprep.subr.bf16.mxu0 %v1021
        %1127 = vmatpush1.bf16.msra.mxu0 %v1020
        %1128 = vmatprep.subr.bf16.mxu0 %v1025
        %1129 = vmatpush1.bf16.msra.mxu0 %v1024
        %1130 = vmatprep.subr.bf16.mxu0 %v1029
        %1131 = vmatpush1.bf16.msra.mxu0 %v1028
        %1132 = vmatprep.subr.bf16.mxu0 %v1033
        %1133 = vmatpush1.bf16.msra.mxu0 %v1032
        %1134 = vmatprep.subr.bf16.mxu0 %v1037
        %1135 = vmatpush1.bf16.msra.mxu0 %v1036
        %1136 = vmatprep.mubr.bf16.mxu0 %v711
        %1137 = vmatmul.mubr.bf16.gmra.mrb[0].mxu0 %v710
        %v1138 = vpop.f32.mrb[0].mxu0
        %v1139 = vadd.f32 0.0, %v1138
        %v1140 = vpop.f32.mrb[0].mxu0
        %v1141 = vadd.f32 0.0, %v1140
        %v1142 = vpop.f32.mrb[0].mxu0
        %v1143 = vadd.f32 0.0, %v1142
        %v1144 = vpop.f32.mrb[0].mxu0
        %v1145 = vadd.f32 0.0, %v1144
        %1146 = vdwg.mxu0
        %1147 = vmatprep.subr.bf16.mxu0 %v979
        %1148 = vmatpush1.bf16.msra.mxu0 %v978
        %1149 = vmatprep.subr.bf16.mxu0 %v983
        %1150 = vmatpush1.bf16.msra.mxu0 %v982
        %1151 = vmatprep.subr.bf16.mxu0 %v987
        %1152 = vmatpush1.bf16.msra.mxu0 %v986
        %1153 = vmatprep.subr.bf16.mxu0 %v991
        %1154 = vmatpush1.bf16.msra.mxu0 %v990
        %1155 = vmatprep.subr.bf16.mxu0 %v995
        %1156 = vmatpush1.bf16.msra.mxu0 %v994
        %1157 = vmatprep.subr.bf16.mxu0 %v999
        %1158 = vmatpush1.bf16.msra.mxu0 %v998
        %1159 = vmatprep.subr.bf16.mxu0 %v1003
        %1160 = vmatpush1.bf16.msra.mxu0 %v1002
        %1161 = vmatprep.subr.bf16.mxu0 %v1007
        %1162 = vmatpush1.bf16.msra.mxu0 %v1006
        %1163 = vmatprep.subr.bf16.mxu0 %v1011
        %1164 = vmatpush1.bf16.msra.mxu0 %v1010
        %1165 = vmatprep.subr.bf16.mxu0 %v1015
        %1166 = vmatpush1.bf16.msra.mxu0 %v1014
        %1167 = vmatprep.subr.bf16.mxu0 %v1019
        %1168 = vmatpush1.bf16.msra.mxu0 %v1018
        %1169 = vmatprep.subr.bf16.mxu0 %v1023
        %1170 = vmatpush1.bf16.msra.mxu0 %v1022
        %1171 = vmatprep.subr.bf16.mxu0 %v1027
        %1172 = vmatpush1.bf16.msra.mxu0 %v1026
        %1173 = vmatprep.subr.bf16.mxu0 %v1031
        %1174 = vmatpush1.bf16.msra.mxu0 %v1030
        %1175 = vmatprep.subr.bf16.mxu0 %v1035
        %1176 = vmatpush1.bf16.msra.mxu0 %v1034
        %1177 = vmatprep.subr.bf16.mxu0 %v1039
        %1178 = vmatpush1.bf16.msra.mxu0 %v1038
        %1179 = vmatprep.mubr.bf16.mxu0 %v711
        %1180 = vmatmul.mubr.bf16.gmra.mrb[0].mxu0 %v710
        %v1181 = vpop.f32.mrb[0].mxu0
        %v1182 = vadd.f32 0.0, %v1181
        %v1183 = vpop.f32.mrb[0].mxu0
        %v1184 = vadd.f32 0.0, %v1183
        %v1185 = vpop.f32.mrb[0].mxu0
        %v1186 = vadd.f32 0.0, %v1185
        %v1187 = vpop.f32.mrb[0].mxu0
        %v1188 = vadd.f32 0.0, %v1187
        %1189 = vdwg.mxu0
        %v1190 = vadd.f32 %v712, %v1139
        %v1191 = vadd.f32 %v713, %v1141
        %v1192 = vadd.f32 %v714, %v1182
        %v1193 = vadd.f32 %v715, %v1184
        %v1194 = vadd.f32 %v716, %v1143
        %v1195 = vadd.f32 %v717, %v1145
        %v1196 = vadd.f32 %v718, %v1186
        %v1197 = vadd.f32 %v719, %v1188
        %1198 = vst [vmem:[#allocation2] sm:$0xff] %v1190
        %1199 = vst [vmem:[#allocation2 + $0x8] sm:$0xff] %v1191
        %1200 = vst [vmem:[#allocation2 + $0x10] sm:$0xff] %v1192
        %1201 = vst [vmem:[#allocation2 + $0x18] sm:$0xff] %v1193
        %1202 = vst [vmem:[#allocation2 + $0x20] sm:$0xff] %v1194
        %1203 = vst [vmem:[#allocation2 + $0x28] sm:$0xff] %v1195
        %1204 = vst [vmem:[#allocation2 + $0x30] sm:$0xff] %v1196
        %1205 = vst [vmem:[#allocation2 + $0x38] sm:$0xff] %v1197
        %p1206 = scmp.eq.s32.totalorder %s34, 7
        // Predicated region
        $region93: #{decoder_forward.1} parent=55 // pred_check
          %p1207 = pneg %p1206
        $region94: #{decoder_forward.1} parent=55 // pred_check_branch
          %1209 = sbr.rel (%p1207) target = $region96
        $region95: #{decoder_forward.1} parent=55 // pred_region
          %v1210 = vld [vmem:[#allocation2] sm:$0xff]
          %v1211 = vld [vmem:[#allocation2 + $0x8] sm:$0xff]
          %v1212 = vld [vmem:[#allocation2 + $0x10] sm:$0xff]
          %v1213 = vld [vmem:[#allocation2 + $0x18] sm:$0xff]
          %v1214 = vld [vmem:[#allocation2 + $0x20] sm:$0xff]
          %v1215 = vld [vmem:[#allocation2 + $0x28] sm:$0xff]
          %v1216 = vld [vmem:[#allocation2 + $0x30] sm:$0xff]
          %v1217 = vld [vmem:[#allocation2 + $0x38] sm:$0xff]
          %v1218 = vld [vmem:[#allocation8] sm:$0xf]
          %v1220 = vlaneseq
          %v1221 = vshrl.u32 %v1220, 7
          %v1222 = vsub.s32 0, %v1221
          %v1223 = vrot.slane %v1218, %v1222
          %v1224 = vlaneseq
          %v1225 = vshrl.u32 %v1224, 7
          %v1226 = vsub.s32 1, %v1225
          %v1227 = vrot.slane %v1218, %v1226
          %v1228 = vlaneseq
          %v1229 = vshrl.u32 %v1228, 7
          %v1230 = vsub.s32 2, %v1229
          %v1231 = vrot.slane %v1218, %v1230
          %v1232 = vlaneseq
          %v1233 = vshrl.u32 %v1232, 7
          %v1234 = vsub.s32 3, %v1233
          %v1235 = vrot.slane %v1218, %v1234
          %v1240 = vadd.f32 %v1210, %v1223
          %v1241 = vadd.f32 %v1211, %v1227
          %v1242 = vadd.f32 %v1212, %v1231
          %v1243 = vadd.f32 %v1213, %v1235
          %v1244 = vadd.f32 %v1214, %v1223
          %v1245 = vadd.f32 %v1215, %v1227
          %v1246 = vadd.f32 %v1216, %v1231
          %v1247 = vadd.f32 %v1217, %v1235
          %v1248 = vmax.f32 %v1240, 0.0
          %v1249 = vmax.f32 %v1241, 0.0
          %v1250 = vmax.f32 %v1242, 0.0
          %v1251 = vmax.f32 %v1243, 0.0
          %v1252 = vmax.f32 %v1244, 0.0
          %v1253 = vmax.f32 %v1245, 0.0
          %v1254 = vmax.f32 %v1246, 0.0
          %v1255 = vmax.f32 %v1247, 0.0
          %v1256 = vpack.c.bf16 %v1252, %v1248
          %v1257 = vpack.c.bf16 %v1253, %v1249
          %v1258 = vpack.c.bf16 %v1254, %v1250
          %v1259 = vpack.c.bf16 %v1255, %v1251
          %v1260 = vld [vmem:[#allocation10] sm:$0xff]
          %v1261 = vld [vmem:[#allocation10 + $0x8] sm:$0xff]
          %v1262 = vld [vmem:[#allocation10 + $0x10] sm:$0xff]
          %v1263 = vld [vmem:[#allocation10 + $0x18] sm:$0xff]
          %v1264 = vld [vmem:[#allocation10 + $0x20] sm:$0xff]
          %v1265 = vld [vmem:[#allocation10 + $0x28] sm:$0xff]
          %v1266 = vld [vmem:[#allocation10 + $0x30] sm:$0xff]
          %v1267 = vld [vmem:[#allocation10 + $0x38] sm:$0xff]
          %v1268 = vld [vmem:[#allocation10 + $0x40] sm:$0xff]
          %v1269 = vld [vmem:[#allocation10 + $0x48] sm:$0xff]
          %v1270 = vld [vmem:[#allocation10 + $0x50] sm:$0xff]
          %v1271 = vld [vmem:[#allocation10 + $0x58] sm:$0xff]
          %v1272 = vld [vmem:[#allocation10 + $0x60] sm:$0xff]
          %v1273 = vld [vmem:[#allocation10 + $0x68] sm:$0xff]
          %v1274 = vld [vmem:[#allocation10 + $0x70] sm:$0xff]
          %v1275 = vld [vmem:[#allocation10 + $0x78] sm:$0xff]
          %v1276 = vld [vmem:[#allocation10 + $0x80] sm:$0xff]
          %v1277 = vld [vmem:[#allocation10 + $0x88] sm:$0xff]
          %v1278 = vld [vmem:[#allocation10 + $0x90] sm:$0xff]
          %v1279 = vld [vmem:[#allocation10 + $0x98] sm:$0xff]
          %v1280 = vld [vmem:[#allocation10 + $0xa0] sm:$0xff]
          %v1281 = vld [vmem:[#allocation10 + $0xa8] sm:$0xff]
          %v1282 = vld [vmem:[#allocation10 + $0xb0] sm:$0xff]
          %v1283 = vld [vmem:[#allocation10 + $0xb8] sm:$0xff]
          %v1284 = vld [vmem:[#allocation10 + $0xc0] sm:$0xff]
          %v1285 = vld [vmem:[#allocation10 + $0xc8] sm:$0xff]
          %v1286 = vld [vmem:[#allocation10 + $0xd0] sm:$0xff]
          %v1287 = vld [vmem:[#allocation10 + $0xd8] sm:$0xff]
          %v1288 = vld [vmem:[#allocation10 + $0xe0] sm:$0xff]
          %v1289 = vld [vmem:[#allocation10 + $0xe8] sm:$0xff]
          %v1290 = vld [vmem:[#allocation10 + $0xf0] sm:$0xff]
          %v1291 = vld [vmem:[#allocation10 + $0xf8] sm:$0xff]
          %v1292 = vld [vmem:[#allocation10 + $0x100] sm:$0xff]
          %v1293 = vld [vmem:[#allocation10 + $0x108] sm:$0xff]
          %v1294 = vld [vmem:[#allocation10 + $0x110] sm:$0xff]
          %v1295 = vld [vmem:[#allocation10 + $0x118] sm:$0xff]
          %v1296 = vld [vmem:[#allocation10 + $0x120] sm:$0xff]
          %v1297 = vld [vmem:[#allocation10 + $0x128] sm:$0xff]
          %v1298 = vld [vmem:[#allocation10 + $0x130] sm:$0xff]
          %v1299 = vld [vmem:[#allocation10 + $0x138] sm:$0xff]
          %v1300 = vld [vmem:[#allocation10 + $0x140] sm:$0xff]
          %v1301 = vld [vmem:[#allocation10 + $0x148] sm:$0xff]
          %v1302 = vld [vmem:[#allocation10 + $0x150] sm:$0xff]
          %v1303 = vld [vmem:[#allocation10 + $0x158] sm:$0xff]
          %v1304 = vld [vmem:[#allocation10 + $0x160] sm:$0xff]
          %v1305 = vld [vmem:[#allocation10 + $0x168] sm:$0xff]
          %v1306 = vld [vmem:[#allocation10 + $0x170] sm:$0xff]
          %v1307 = vld [vmem:[#allocation10 + $0x178] sm:$0xff]
          %v1308 = vld [vmem:[#allocation10 + $0x180] sm:$0xff]
          %v1309 = vld [vmem:[#allocation10 + $0x188] sm:$0xff]
          %v1310 = vld [vmem:[#allocation10 + $0x190] sm:$0xff]
          %v1311 = vld [vmem:[#allocation10 + $0x198] sm:$0xff]
          %v1312 = vld [vmem:[#allocation10 + $0x1a0] sm:$0xff]
          %v1313 = vld [vmem:[#allocation10 + $0x1a8] sm:$0xff]
          %v1314 = vld [vmem:[#allocation10 + $0x1b0] sm:$0xff]
          %v1315 = vld [vmem:[#allocation10 + $0x1b8] sm:$0xff]
          %v1316 = vld [vmem:[#allocation10 + $0x1c0] sm:$0xff]
          %v1317 = vld [vmem:[#allocation10 + $0x1c8] sm:$0xff]
          %v1318 = vld [vmem:[#allocation10 + $0x1d0] sm:$0xff]
          %v1319 = vld [vmem:[#allocation10 + $0x1d8] sm:$0xff]
          %v1320 = vld [vmem:[#allocation10 + $0x1e0] sm:$0xff]
          %v1321 = vld [vmem:[#allocation10 + $0x1e8] sm:$0xff]
          %v1322 = vld [vmem:[#allocation10 + $0x1f0] sm:$0xff]
          %v1323 = vld [vmem:[#allocation10 + $0x1f8] sm:$0xff]
          %v1324 = vld [vmem:[#allocation10 + $0x200] sm:$0xff]
          %v1325 = vld [vmem:[#allocation10 + $0x208] sm:$0xff]
          %v1326 = vld [vmem:[#allocation10 + $0x210] sm:$0xff]
          %v1327 = vld [vmem:[#allocation10 + $0x218] sm:$0xff]
          %v1328 = vld [vmem:[#allocation10 + $0x220] sm:$0xff]
          %v1329 = vld [vmem:[#allocation10 + $0x228] sm:$0xff]
          %v1330 = vld [vmem:[#allocation10 + $0x230] sm:$0xff]
          %v1331 = vld [vmem:[#allocation10 + $0x238] sm:$0xff]
          %v1332 = vld [vmem:[#allocation10 + $0x240] sm:$0xff]
          %v1333 = vld [vmem:[#allocation10 + $0x248] sm:$0xff]
          %v1334 = vld [vmem:[#allocation10 + $0x250] sm:$0xff]
          %v1335 = vld [vmem:[#allocation10 + $0x258] sm:$0xff]
          %v1336 = vld [vmem:[#allocation10 + $0x260] sm:$0xff]
          %v1337 = vld [vmem:[#allocation10 + $0x268] sm:$0xff]
          %v1338 = vld [vmem:[#allocation10 + $0x270] sm:$0xff]
          %v1339 = vld [vmem:[#allocation10 + $0x278] sm:$0xff]
          %v1340 = vld [vmem:[#allocation10 + $0x280] sm:$0xff]
          %v1341 = vld [vmem:[#allocation10 + $0x288] sm:$0xff]
          %v1342 = vld [vmem:[#allocation10 + $0x290] sm:$0xff]
          %v1343 = vld [vmem:[#allocation10 + $0x298] sm:$0xff]
          %v1344 = vld [vmem:[#allocation10 + $0x2a0] sm:$0xff]
          %v1345 = vld [vmem:[#allocation10 + $0x2a8] sm:$0xff]
          %v1346 = vld [vmem:[#allocation10 + $0x2b0] sm:$0xff]
          %v1347 = vld [vmem:[#allocation10 + $0x2b8] sm:$0xff]
          %v1348 = vld [vmem:[#allocation10 + $0x2c0] sm:$0xff]
          %v1349 = vld [vmem:[#allocation10 + $0x2c8] sm:$0xff]
          %v1350 = vld [vmem:[#allocation10 + $0x2d0] sm:$0xff]
          %v1351 = vld [vmem:[#allocation10 + $0x2d8] sm:$0xff]
          %v1352 = vld [vmem:[#allocation10 + $0x2e0] sm:$0xff]
          %v1353 = vld [vmem:[#allocation10 + $0x2e8] sm:$0xff]
          %v1354 = vld [vmem:[#allocation10 + $0x2f0] sm:$0xff]
          %v1355 = vld [vmem:[#allocation10 + $0x2f8] sm:$0xff]
          %v1356 = vld [vmem:[#allocation10 + $0x300] sm:$0xff]
          %v1357 = vld [vmem:[#allocation10 + $0x308] sm:$0xff]
          %v1358 = vld [vmem:[#allocation10 + $0x310] sm:$0xff]
          %v1359 = vld [vmem:[#allocation10 + $0x318] sm:$0xff]
          %v1360 = vld [vmem:[#allocation10 + $0x320] sm:$0xff]
          %v1361 = vld [vmem:[#allocation10 + $0x328] sm:$0xff]
          %v1362 = vld [vmem:[#allocation10 + $0x330] sm:$0xff]
          %v1363 = vld [vmem:[#allocation10 + $0x338] sm:$0xff]
          %v1364 = vld [vmem:[#allocation10 + $0x340] sm:$0xff]
          %v1365 = vld [vmem:[#allocation10 + $0x348] sm:$0xff]
          %v1366 = vld [vmem:[#allocation10 + $0x350] sm:$0xff]
          %v1367 = vld [vmem:[#allocation10 + $0x358] sm:$0xff]
          %v1368 = vld [vmem:[#allocation10 + $0x360] sm:$0xff]
          %v1369 = vld [vmem:[#allocation10 + $0x368] sm:$0xff]
          %v1370 = vld [vmem:[#allocation10 + $0x370] sm:$0xff]
          %v1371 = vld [vmem:[#allocation10 + $0x378] sm:$0xff]
          %v1372 = vld [vmem:[#allocation10 + $0x380] sm:$0xff]
          %v1373 = vld [vmem:[#allocation10 + $0x388] sm:$0xff]
          %v1374 = vld [vmem:[#allocation10 + $0x390] sm:$0xff]
          %v1375 = vld [vmem:[#allocation10 + $0x398] sm:$0xff]
          %v1376 = vld [vmem:[#allocation10 + $0x3a0] sm:$0xff]
          %v1377 = vld [vmem:[#allocation10 + $0x3a8] sm:$0xff]
          %v1378 = vld [vmem:[#allocation10 + $0x3b0] sm:$0xff]
          %v1379 = vld [vmem:[#allocation10 + $0x3b8] sm:$0xff]
          %v1380 = vld [vmem:[#allocation10 + $0x3c0] sm:$0xff]
          %v1381 = vld [vmem:[#allocation10 + $0x3c8] sm:$0xff]
          %v1382 = vld [vmem:[#allocation10 + $0x3d0] sm:$0xff]
          %v1383 = vld [vmem:[#allocation10 + $0x3d8] sm:$0xff]
          %v1384 = vld [vmem:[#allocation10 + $0x3e0] sm:$0xff]
          %v1385 = vld [vmem:[#allocation10 + $0x3e8] sm:$0xff]
          %v1386 = vld [vmem:[#allocation10 + $0x3f0] sm:$0xff]
          %v1387 = vld [vmem:[#allocation10 + $0x3f8] sm:$0xff]
          %v1388 = vld [vmem:[#allocation11] sm:$0xf]
          %v1390 = vlaneseq
          %v1391 = vshrl.u32 %v1390, 7
          %v1392 = vsub.s32 0, %v1391
          %v1393 = vrot.slane %v1388, %v1392
          %v1394 = vlaneseq
          %v1395 = vshrl.u32 %v1394, 7
          %v1396 = vsub.s32 1, %v1395
          %v1397 = vrot.slane %v1388, %v1396
          %v1398 = vlaneseq
          %v1399 = vshrl.u32 %v1398, 7
          %v1400 = vsub.s32 2, %v1399
          %v1401 = vrot.slane %v1388, %v1400
          %v1402 = vlaneseq
          %v1403 = vshrl.u32 %v1402, 7
          %v1404 = vsub.s32 3, %v1403
          %v1405 = vrot.slane %v1388, %v1404
          %v1538 = vunpack.c.l.b16 %v1260
          %v1539 = vunpack.c.h.b16 %v1260
          %v1540 = vunpack.c.l.b16 %v1261
          %v1541 = vunpack.c.h.b16 %v1261
          %v1542 = vunpack.c.l.b16 %v1262
          %v1543 = vunpack.c.h.b16 %v1262
          %v1544 = vunpack.c.l.b16 %v1263
          %v1545 = vunpack.c.h.b16 %v1263
          %v1546 = vunpack.c.l.b16 %v1264
          %v1547 = vunpack.c.h.b16 %v1264
          %v1548 = vunpack.c.l.b16 %v1265
          %v1549 = vunpack.c.h.b16 %v1265
          %v1550 = vunpack.c.l.b16 %v1266
          %v1551 = vunpack.c.h.b16 %v1266
          %v1552 = vunpack.c.l.b16 %v1267
          %v1553 = vunpack.c.h.b16 %v1267
          %v1554 = vunpack.c.l.b16 %v1268
          %v1555 = vunpack.c.h.b16 %v1268
          %v1556 = vunpack.c.l.b16 %v1269
          %v1557 = vunpack.c.h.b16 %v1269
          %v1558 = vunpack.c.l.b16 %v1270
          %v1559 = vunpack.c.h.b16 %v1270
          %v1560 = vunpack.c.l.b16 %v1271
          %v1561 = vunpack.c.h.b16 %v1271
          %v1562 = vunpack.c.l.b16 %v1272
          %v1563 = vunpack.c.h.b16 %v1272
          %v1564 = vunpack.c.l.b16 %v1273
          %v1565 = vunpack.c.h.b16 %v1273
          %v1566 = vunpack.c.l.b16 %v1274
          %v1567 = vunpack.c.h.b16 %v1274
          %v1568 = vunpack.c.l.b16 %v1275
          %v1569 = vunpack.c.h.b16 %v1275
          %v1570 = vunpack.c.l.b16 %v1276
          %v1571 = vunpack.c.h.b16 %v1276
          %v1572 = vunpack.c.l.b16 %v1277
          %v1573 = vunpack.c.h.b16 %v1277
          %v1574 = vunpack.c.l.b16 %v1278
          %v1575 = vunpack.c.h.b16 %v1278
          %v1576 = vunpack.c.l.b16 %v1279
          %v1577 = vunpack.c.h.b16 %v1279
          %v1578 = vunpack.c.l.b16 %v1280
          %v1579 = vunpack.c.h.b16 %v1280
          %v1580 = vunpack.c.l.b16 %v1281
          %v1581 = vunpack.c.h.b16 %v1281
          %v1582 = vunpack.c.l.b16 %v1282
          %v1583 = vunpack.c.h.b16 %v1282
          %v1584 = vunpack.c.l.b16 %v1283
          %v1585 = vunpack.c.h.b16 %v1283
          %v1586 = vunpack.c.l.b16 %v1284
          %v1587 = vunpack.c.h.b16 %v1284
          %v1588 = vunpack.c.l.b16 %v1285
          %v1589 = vunpack.c.h.b16 %v1285
          %v1590 = vunpack.c.l.b16 %v1286
          %v1591 = vunpack.c.h.b16 %v1286
          %v1592 = vunpack.c.l.b16 %v1287
          %v1593 = vunpack.c.h.b16 %v1287
          %v1594 = vunpack.c.l.b16 %v1288
          %v1595 = vunpack.c.h.b16 %v1288
          %v1596 = vunpack.c.l.b16 %v1289
          %v1597 = vunpack.c.h.b16 %v1289
          %v1598 = vunpack.c.l.b16 %v1290
          %v1599 = vunpack.c.h.b16 %v1290
          %v1600 = vunpack.c.l.b16 %v1291
          %v1601 = vunpack.c.h.b16 %v1291
          %v1602 = vunpack.c.l.b16 %v1292
          %v1603 = vunpack.c.h.b16 %v1292
          %v1604 = vunpack.c.l.b16 %v1293
          %v1605 = vunpack.c.h.b16 %v1293
          %v1606 = vunpack.c.l.b16 %v1294
          %v1607 = vunpack.c.h.b16 %v1294
          %v1608 = vunpack.c.l.b16 %v1295
          %v1609 = vunpack.c.h.b16 %v1295
          %v1610 = vunpack.c.l.b16 %v1296
          %v1611 = vunpack.c.h.b16 %v1296
          %v1612 = vunpack.c.l.b16 %v1297
          %v1613 = vunpack.c.h.b16 %v1297
          %v1614 = vunpack.c.l.b16 %v1298
          %v1615 = vunpack.c.h.b16 %v1298
          %v1616 = vunpack.c.l.b16 %v1299
          %v1617 = vunpack.c.h.b16 %v1299
          %v1618 = vunpack.c.l.b16 %v1300
          %v1619 = vunpack.c.h.b16 %v1300
          %v1620 = vunpack.c.l.b16 %v1301
          %v1621 = vunpack.c.h.b16 %v1301
          %v1622 = vunpack.c.l.b16 %v1302
          %v1623 = vunpack.c.h.b16 %v1302
          %v1624 = vunpack.c.l.b16 %v1303
          %v1625 = vunpack.c.h.b16 %v1303
          %v1626 = vunpack.c.l.b16 %v1304
          %v1627 = vunpack.c.h.b16 %v1304
          %v1628 = vunpack.c.l.b16 %v1305
          %v1629 = vunpack.c.h.b16 %v1305
          %v1630 = vunpack.c.l.b16 %v1306
          %v1631 = vunpack.c.h.b16 %v1306
          %v1632 = vunpack.c.l.b16 %v1307
          %v1633 = vunpack.c.h.b16 %v1307
          %v1634 = vunpack.c.l.b16 %v1308
          %v1635 = vunpack.c.h.b16 %v1308
          %v1636 = vunpack.c.l.b16 %v1309
          %v1637 = vunpack.c.h.b16 %v1309
          %v1638 = vunpack.c.l.b16 %v1310
          %v1639 = vunpack.c.h.b16 %v1310
          %v1640 = vunpack.c.l.b16 %v1311
          %v1641 = vunpack.c.h.b16 %v1311
          %v1642 = vunpack.c.l.b16 %v1312
          %v1643 = vunpack.c.h.b16 %v1312
          %v1644 = vunpack.c.l.b16 %v1313
          %v1645 = vunpack.c.h.b16 %v1313
          %v1646 = vunpack.c.l.b16 %v1314
          %v1647 = vunpack.c.h.b16 %v1314
          %v1648 = vunpack.c.l.b16 %v1315
          %v1649 = vunpack.c.h.b16 %v1315
          %v1650 = vunpack.c.l.b16 %v1316
          %v1651 = vunpack.c.h.b16 %v1316
          %v1652 = vunpack.c.l.b16 %v1317
          %v1653 = vunpack.c.h.b16 %v1317
          %v1654 = vunpack.c.l.b16 %v1318
          %v1655 = vunpack.c.h.b16 %v1318
          %v1656 = vunpack.c.l.b16 %v1319
          %v1657 = vunpack.c.h.b16 %v1319
          %v1658 = vunpack.c.l.b16 %v1320
          %v1659 = vunpack.c.h.b16 %v1320
          %v1660 = vunpack.c.l.b16 %v1321
          %v1661 = vunpack.c.h.b16 %v1321
          %v1662 = vunpack.c.l.b16 %v1322
          %v1663 = vunpack.c.h.b16 %v1322
          %v1664 = vunpack.c.l.b16 %v1323
          %v1665 = vunpack.c.h.b16 %v1323
          %v1666 = vunpack.c.l.b16 %v1324
          %v1667 = vunpack.c.h.b16 %v1324
          %v1668 = vunpack.c.l.b16 %v1325
          %v1669 = vunpack.c.h.b16 %v1325
          %v1670 = vunpack.c.l.b16 %v1326
          %v1671 = vunpack.c.h.b16 %v1326
          %v1672 = vunpack.c.l.b16 %v1327
          %v1673 = vunpack.c.h.b16 %v1327
          %v1674 = vunpack.c.l.b16 %v1328
          %v1675 = vunpack.c.h.b16 %v1328
          %v1676 = vunpack.c.l.b16 %v1329
          %v1677 = vunpack.c.h.b16 %v1329
          %v1678 = vunpack.c.l.b16 %v1330
          %v1679 = vunpack.c.h.b16 %v1330
          %v1680 = vunpack.c.l.b16 %v1331
          %v1681 = vunpack.c.h.b16 %v1331
          %v1682 = vunpack.c.l.b16 %v1332
          %v1683 = vunpack.c.h.b16 %v1332
          %v1684 = vunpack.c.l.b16 %v1333
          %v1685 = vunpack.c.h.b16 %v1333
          %v1686 = vunpack.c.l.b16 %v1334
          %v1687 = vunpack.c.h.b16 %v1334
          %v1688 = vunpack.c.l.b16 %v1335
          %v1689 = vunpack.c.h.b16 %v1335
          %v1690 = vunpack.c.l.b16 %v1336
          %v1691 = vunpack.c.h.b16 %v1336
          %v1692 = vunpack.c.l.b16 %v1337
          %v1693 = vunpack.c.h.b16 %v1337
          %v1694 = vunpack.c.l.b16 %v1338
          %v1695 = vunpack.c.h.b16 %v1338
          %v1696 = vunpack.c.l.b16 %v1339
          %v1697 = vunpack.c.h.b16 %v1339
          %v1698 = vunpack.c.l.b16 %v1340
          %v1699 = vunpack.c.h.b16 %v1340
          %v1700 = vunpack.c.l.b16 %v1341
          %v1701 = vunpack.c.h.b16 %v1341
          %v1702 = vunpack.c.l.b16 %v1342
          %v1703 = vunpack.c.h.b16 %v1342
          %v1704 = vunpack.c.l.b16 %v1343
          %v1705 = vunpack.c.h.b16 %v1343
          %v1706 = vunpack.c.l.b16 %v1344
          %v1707 = vunpack.c.h.b16 %v1344
          %v1708 = vunpack.c.l.b16 %v1345
          %v1709 = vunpack.c.h.b16 %v1345
          %v1710 = vunpack.c.l.b16 %v1346
          %v1711 = vunpack.c.h.b16 %v1346
          %v1712 = vunpack.c.l.b16 %v1347
          %v1713 = vunpack.c.h.b16 %v1347
          %v1714 = vunpack.c.l.b16 %v1348
          %v1715 = vunpack.c.h.b16 %v1348
          %v1716 = vunpack.c.l.b16 %v1349
          %v1717 = vunpack.c.h.b16 %v1349
          %v1718 = vunpack.c.l.b16 %v1350
          %v1719 = vunpack.c.h.b16 %v1350
          %v1720 = vunpack.c.l.b16 %v1351
          %v1721 = vunpack.c.h.b16 %v1351
          %v1722 = vunpack.c.l.b16 %v1352
          %v1723 = vunpack.c.h.b16 %v1352
          %v1724 = vunpack.c.l.b16 %v1353
          %v1725 = vunpack.c.h.b16 %v1353
          %v1726 = vunpack.c.l.b16 %v1354
          %v1727 = vunpack.c.h.b16 %v1354
          %v1728 = vunpack.c.l.b16 %v1355
          %v1729 = vunpack.c.h.b16 %v1355
          %v1730 = vunpack.c.l.b16 %v1356
          %v1731 = vunpack.c.h.b16 %v1356
          %v1732 = vunpack.c.l.b16 %v1357
          %v1733 = vunpack.c.h.b16 %v1357
          %v1734 = vunpack.c.l.b16 %v1358
          %v1735 = vunpack.c.h.b16 %v1358
          %v1736 = vunpack.c.l.b16 %v1359
          %v1737 = vunpack.c.h.b16 %v1359
          %v1738 = vunpack.c.l.b16 %v1360
          %v1739 = vunpack.c.h.b16 %v1360
          %v1740 = vunpack.c.l.b16 %v1361
          %v1741 = vunpack.c.h.b16 %v1361
          %v1742 = vunpack.c.l.b16 %v1362
          %v1743 = vunpack.c.h.b16 %v1362
          %v1744 = vunpack.c.l.b16 %v1363
          %v1745 = vunpack.c.h.b16 %v1363
          %v1746 = vunpack.c.l.b16 %v1364
          %v1747 = vunpack.c.h.b16 %v1364
          %v1748 = vunpack.c.l.b16 %v1365
          %v1749 = vunpack.c.h.b16 %v1365
          %v1750 = vunpack.c.l.b16 %v1366
          %v1751 = vunpack.c.h.b16 %v1366
          %v1752 = vunpack.c.l.b16 %v1367
          %v1753 = vunpack.c.h.b16 %v1367
          %v1754 = vunpack.c.l.b16 %v1368
          %v1755 = vunpack.c.h.b16 %v1368
          %v1756 = vunpack.c.l.b16 %v1369
          %v1757 = vunpack.c.h.b16 %v1369
          %v1758 = vunpack.c.l.b16 %v1370
          %v1759 = vunpack.c.h.b16 %v1370
          %v1760 = vunpack.c.l.b16 %v1371
          %v1761 = vunpack.c.h.b16 %v1371
          %v1762 = vunpack.c.l.b16 %v1372
          %v1763 = vunpack.c.h.b16 %v1372
          %v1764 = vunpack.c.l.b16 %v1373
          %v1765 = vunpack.c.h.b16 %v1373
          %v1766 = vunpack.c.l.b16 %v1374
          %v1767 = vunpack.c.h.b16 %v1374
          %v1768 = vunpack.c.l.b16 %v1375
          %v1769 = vunpack.c.h.b16 %v1375
          %v1770 = vunpack.c.l.b16 %v1376
          %v1771 = vunpack.c.h.b16 %v1376
          %v1772 = vunpack.c.l.b16 %v1377
          %v1773 = vunpack.c.h.b16 %v1377
          %v1774 = vunpack.c.l.b16 %v1378
          %v1775 = vunpack.c.h.b16 %v1378
          %v1776 = vunpack.c.l.b16 %v1379
          %v1777 = vunpack.c.h.b16 %v1379
          %v1778 = vunpack.c.l.b16 %v1380
          %v1779 = vunpack.c.h.b16 %v1380
          %v1780 = vunpack.c.l.b16 %v1381
          %v1781 = vunpack.c.h.b16 %v1381
          %v1782 = vunpack.c.l.b16 %v1382
          %v1783 = vunpack.c.h.b16 %v1382
          %v1784 = vunpack.c.l.b16 %v1383
          %v1785 = vunpack.c.h.b16 %v1383
          %v1786 = vunpack.c.l.b16 %v1384
          %v1787 = vunpack.c.h.b16 %v1384
          %v1788 = vunpack.c.l.b16 %v1385
          %v1789 = vunpack.c.h.b16 %v1385
          %v1790 = vunpack.c.l.b16 %v1386
          %v1791 = vunpack.c.h.b16 %v1386
          %v1792 = vunpack.c.l.b16 %v1387
          %v1793 = vunpack.c.h.b16 %v1387
          %v1794 = vpack.c.b16 %v1542, %v1538
          %v1795 = vpack.c.b16 %v1543, %v1539
          %v1796 = vpack.c.b16 %v1544, %v1540
          %v1797 = vpack.c.b16 %v1545, %v1541
          %v1798 = vpack.c.b16 %v1550, %v1546
          %v1799 = vpack.c.b16 %v1551, %v1547
          %v1800 = vpack.c.b16 %v1552, %v1548
          %v1801 = vpack.c.b16 %v1553, %v1549
          %v1802 = vpack.c.b16 %v1558, %v1554
          %v1803 = vpack.c.b16 %v1559, %v1555
          %v1804 = vpack.c.b16 %v1560, %v1556
          %v1805 = vpack.c.b16 %v1561, %v1557
          %v1806 = vpack.c.b16 %v1566, %v1562
          %v1807 = vpack.c.b16 %v1567, %v1563
          %v1808 = vpack.c.b16 %v1568, %v1564
          %v1809 = vpack.c.b16 %v1569, %v1565
          %v1810 = vpack.c.b16 %v1574, %v1570
          %v1811 = vpack.c.b16 %v1575, %v1571
          %v1812 = vpack.c.b16 %v1576, %v1572
          %v1813 = vpack.c.b16 %v1577, %v1573
          %v1814 = vpack.c.b16 %v1582, %v1578
          %v1815 = vpack.c.b16 %v1583, %v1579
          %v1816 = vpack.c.b16 %v1584, %v1580
          %v1817 = vpack.c.b16 %v1585, %v1581
          %v1818 = vpack.c.b16 %v1590, %v1586
          %v1819 = vpack.c.b16 %v1591, %v1587
          %v1820 = vpack.c.b16 %v1592, %v1588
          %v1821 = vpack.c.b16 %v1593, %v1589
          %v1822 = vpack.c.b16 %v1598, %v1594
          %v1823 = vpack.c.b16 %v1599, %v1595
          %v1824 = vpack.c.b16 %v1600, %v1596
          %v1825 = vpack.c.b16 %v1601, %v1597
          %v1826 = vpack.c.b16 %v1606, %v1602
          %v1827 = vpack.c.b16 %v1607, %v1603
          %v1828 = vpack.c.b16 %v1608, %v1604
          %v1829 = vpack.c.b16 %v1609, %v1605
          %v1830 = vpack.c.b16 %v1614, %v1610
          %v1831 = vpack.c.b16 %v1615, %v1611
          %v1832 = vpack.c.b16 %v1616, %v1612
          %v1833 = vpack.c.b16 %v1617, %v1613
          %v1834 = vpack.c.b16 %v1622, %v1618
          %v1835 = vpack.c.b16 %v1623, %v1619
          %v1836 = vpack.c.b16 %v1624, %v1620
          %v1837 = vpack.c.b16 %v1625, %v1621
          %v1838 = vpack.c.b16 %v1630, %v1626
          %v1839 = vpack.c.b16 %v1631, %v1627
          %v1840 = vpack.c.b16 %v1632, %v1628
          %v1841 = vpack.c.b16 %v1633, %v1629
          %v1842 = vpack.c.b16 %v1638, %v1634
          %v1843 = vpack.c.b16 %v1639, %v1635
          %v1844 = vpack.c.b16 %v1640, %v1636
          %v1845 = vpack.c.b16 %v1641, %v1637
          %v1846 = vpack.c.b16 %v1646, %v1642
          %v1847 = vpack.c.b16 %v1647, %v1643
          %v1848 = vpack.c.b16 %v1648, %v1644
          %v1849 = vpack.c.b16 %v1649, %v1645
          %v1850 = vpack.c.b16 %v1654, %v1650
          %v1851 = vpack.c.b16 %v1655, %v1651
          %v1852 = vpack.c.b16 %v1656, %v1652
          %v1853 = vpack.c.b16 %v1657, %v1653
          %v1854 = vpack.c.b16 %v1662, %v1658
          %v1855 = vpack.c.b16 %v1663, %v1659
          %v1856 = vpack.c.b16 %v1664, %v1660
          %v1857 = vpack.c.b16 %v1665, %v1661
          %v1858 = vpack.c.b16 %v1670, %v1666
          %v1859 = vpack.c.b16 %v1671, %v1667
          %v1860 = vpack.c.b16 %v1672, %v1668
          %v1861 = vpack.c.b16 %v1673, %v1669
          %v1862 = vpack.c.b16 %v1678, %v1674
          %v1863 = vpack.c.b16 %v1679, %v1675
          %v1864 = vpack.c.b16 %v1680, %v1676
          %v1865 = vpack.c.b16 %v1681, %v1677
          %v1866 = vpack.c.b16 %v1686, %v1682
          %v1867 = vpack.c.b16 %v1687, %v1683
          %v1868 = vpack.c.b16 %v1688, %v1684
          %v1869 = vpack.c.b16 %v1689, %v1685
          %v1870 = vpack.c.b16 %v1694, %v1690
          %v1871 = vpack.c.b16 %v1695, %v1691
          %v1872 = vpack.c.b16 %v1696, %v1692
          %v1873 = vpack.c.b16 %v1697, %v1693
          %v1874 = vpack.c.b16 %v1702, %v1698
          %v1875 = vpack.c.b16 %v1703, %v1699
          %v1876 = vpack.c.b16 %v1704, %v1700
          %v1877 = vpack.c.b16 %v1705, %v1701
          %v1878 = vpack.c.b16 %v1710, %v1706
          %v1879 = vpack.c.b16 %v1711, %v1707
          %v1880 = vpack.c.b16 %v1712, %v1708
          %v1881 = vpack.c.b16 %v1713, %v1709
          %v1882 = vpack.c.b16 %v1718, %v1714
          %v1883 = vpack.c.b16 %v1719, %v1715
          %v1884 = vpack.c.b16 %v1720, %v1716
          %v1885 = vpack.c.b16 %v1721, %v1717
          %v1886 = vpack.c.b16 %v1726, %v1722
          %v1887 = vpack.c.b16 %v1727, %v1723
          %v1888 = vpack.c.b16 %v1728, %v1724
          %v1889 = vpack.c.b16 %v1729, %v1725
          %v1890 = vpack.c.b16 %v1734, %v1730
          %v1891 = vpack.c.b16 %v1735, %v1731
          %v1892 = vpack.c.b16 %v1736, %v1732
          %v1893 = vpack.c.b16 %v1737, %v1733
          %v1894 = vpack.c.b16 %v1742, %v1738
          %v1895 = vpack.c.b16 %v1743, %v1739
          %v1896 = vpack.c.b16 %v1744, %v1740
          %v1897 = vpack.c.b16 %v1745, %v1741
          %v1898 = vpack.c.b16 %v1750, %v1746
          %v1899 = vpack.c.b16 %v1751, %v1747
          %v1900 = vpack.c.b16 %v1752, %v1748
          %v1901 = vpack.c.b16 %v1753, %v1749
          %v1902 = vpack.c.b16 %v1758, %v1754
          %v1903 = vpack.c.b16 %v1759, %v1755
          %v1904 = vpack.c.b16 %v1760, %v1756
          %v1905 = vpack.c.b16 %v1761, %v1757
          %v1906 = vpack.c.b16 %v1766, %v1762
          %v1907 = vpack.c.b16 %v1767, %v1763
          %v1908 = vpack.c.b16 %v1768, %v1764
          %v1909 = vpack.c.b16 %v1769, %v1765
          %v1910 = vpack.c.b16 %v1774, %v1770
          %v1911 = vpack.c.b16 %v1775, %v1771
          %v1912 = vpack.c.b16 %v1776, %v1772
          %v1913 = vpack.c.b16 %v1777, %v1773
          %v1914 = vpack.c.b16 %v1782, %v1778
          %v1915 = vpack.c.b16 %v1783, %v1779
          %v1916 = vpack.c.b16 %v1784, %v1780
          %v1917 = vpack.c.b16 %v1785, %v1781
          %v1918 = vpack.c.b16 %v1790, %v1786
          %v1919 = vpack.c.b16 %v1791, %v1787
          %v1920 = vpack.c.b16 %v1792, %v1788
          %v1921 = vpack.c.b16 %v1793, %v1789
          %2050 = vmatprep.subr.bf16.mxu0 %v1795
          %2051 = vmatpush1.bf16.msra.mxu0 %v1794
          %2052 = vmatprep.subr.bf16.mxu0 %v1799
          %2053 = vmatpush1.bf16.msra.mxu0 %v1798
          %2054 = vmatprep.subr.bf16.mxu0 %v1803
          %2055 = vmatpush1.bf16.msra.mxu0 %v1802
          %2056 = vmatprep.subr.bf16.mxu0 %v1807
          %2057 = vmatpush1.bf16.msra.mxu0 %v1806
          %2058 = vmatprep.subr.bf16.mxu0 %v1811
          %2059 = vmatpush1.bf16.msra.mxu0 %v1810
          %2060 = vmatprep.subr.bf16.mxu0 %v1815
          %2061 = vmatpush1.bf16.msra.mxu0 %v1814
          %2062 = vmatprep.subr.bf16.mxu0 %v1819
          %2063 = vmatpush1.bf16.msra.mxu0 %v1818
          %2064 = vmatprep.subr.bf16.mxu0 %v1823
          %2065 = vmatpush1.bf16.msra.mxu0 %v1822
          %2066 = vmatprep.subr.bf16.mxu0 %v1827
          %2067 = vmatpush1.bf16.msra.mxu0 %v1826
          %2068 = vmatprep.subr.bf16.mxu0 %v1831
          %2069 = vmatpush1.bf16.msra.mxu0 %v1830
          %2070 = vmatprep.subr.bf16.mxu0 %v1835
          %2071 = vmatpush1.bf16.msra.mxu0 %v1834
          %2072 = vmatprep.subr.bf16.mxu0 %v1839
          %2073 = vmatpush1.bf16.msra.mxu0 %v1838
          %2074 = vmatprep.subr.bf16.mxu0 %v1843
          %2075 = vmatpush1.bf16.msra.mxu0 %v1842
          %2076 = vmatprep.subr.bf16.mxu0 %v1847
          %2077 = vmatpush1.bf16.msra.mxu0 %v1846
          %2078 = vmatprep.subr.bf16.mxu0 %v1851
          %2079 = vmatpush1.bf16.msra.mxu0 %v1850
          %2080 = vmatprep.subr.bf16.mxu0 %v1855
          %2081 = vmatpush1.bf16.msra.mxu0 %v1854
          %2082 = vmatprep.mubr.bf16.mxu0 %v1257
          %2083 = vmatmul.mubr.bf16.gmra.mrb[0].mxu0 %v1256
          %v2084 = vpop.f32.mrb[0].mxu0
          %v2085 = vadd.f32 %v1393, %v2084
          %v2086 = vpop.f32.mrb[0].mxu0
          %v2087 = vadd.f32 %v1397, %v2086
          %v2088 = vpop.f32.mrb[0].mxu0
          %v2089 = vadd.f32 %v1393, %v2088
          %v2090 = vpop.f32.mrb[0].mxu0
          %v2091 = vadd.f32 %v1397, %v2090
          %2092 = vdwg.mxu0
          %2093 = vmatprep.subr.bf16.mxu0 %v1859
          %2094 = vmatpush1.bf16.msra.mxu0 %v1858
          %2095 = vmatprep.subr.bf16.mxu0 %v1863
          %2096 = vmatpush1.bf16.msra.mxu0 %v1862
          %2097 = vmatprep.subr.bf16.mxu0 %v1867
          %2098 = vmatpush1.bf16.msra.mxu0 %v1866
          %2099 = vmatprep.subr.bf16.mxu0 %v1871
          %2100 = vmatpush1.bf16.msra.mxu0 %v1870
          %2101 = vmatprep.subr.bf16.mxu0 %v1875
          %2102 = vmatpush1.bf16.msra.mxu0 %v1874
          %2103 = vmatprep.subr.bf16.mxu0 %v1879
          %2104 = vmatpush1.bf16.msra.mxu0 %v1878
          %2105 = vmatprep.subr.bf16.mxu0 %v1883
          %2106 = vmatpush1.bf16.msra.mxu0 %v1882
          %2107 = vmatprep.subr.bf16.mxu0 %v1887
          %2108 = vmatpush1.bf16.msra.mxu0 %v1886
          %2109 = vmatprep.subr.bf16.mxu0 %v1891
          %2110 = vmatpush1.bf16.msra.mxu0 %v1890
          %2111 = vmatprep.subr.bf16.mxu0 %v1895
          %2112 = vmatpush1.bf16.msra.mxu0 %v1894
          %2113 = vmatprep.subr.bf16.mxu0 %v1899
          %2114 = vmatpush1.bf16.msra.mxu0 %v1898
          %2115 = vmatprep.subr.bf16.mxu0 %v1903
          %2116 = vmatpush1.bf16.msra.mxu0 %v1902
          %2117 = vmatprep.subr.bf16.mxu0 %v1907
          %2118 = vmatpush1.bf16.msra.mxu0 %v1906
          %2119 = vmatprep.subr.bf16.mxu0 %v1911
          %2120 = vmatpush1.bf16.msra.mxu0 %v1910
          %2121 = vmatprep.subr.bf16.mxu0 %v1915
          %2122 = vmatpush1.bf16.msra.mxu0 %v1914
          %2123 = vmatprep.subr.bf16.mxu0 %v1919
          %2124 = vmatpush1.bf16.msra.mxu0 %v1918
          %2125 = vmatprep.mubr.bf16.mxu0 %v1259
          %2126 = vmatmul.mubr.bf16.gmra.mrb[0].mxu0 %v1258
          %v2127 = vpop.f32.mrb[0].mxu0
          %v2128 = vadd.f32 %v2085, %v2127
          %v2129 = vpop.f32.mrb[0].mxu0
          %v2130 = vadd.f32 %v2087, %v2129
          %v2131 = vpop.f32.mrb[0].mxu0
          %v2132 = vadd.f32 %v2089, %v2131
          %v2133 = vpop.f32.mrb[0].mxu0
          %v2134 = vadd.f32 %v2091, %v2133
          %2135 = vdwg.mxu0
          %2136 = vmatprep.subr.bf16.mxu0 %v1797
          %2137 = vmatpush1.bf16.msra.mxu0 %v1796
          %2138 = vmatprep.subr.bf16.mxu0 %v1801
          %2139 = vmatpush1.bf16.msra.mxu0 %v1800
          %2140 = vmatprep.subr.bf16.mxu0 %v1805
          %2141 = vmatpush1.bf16.msra.mxu0 %v1804
          %2142 = vmatprep.subr.bf16.mxu0 %v1809
          %2143 = vmatpush1.bf16.msra.mxu0 %v1808
          %2144 = vmatprep.subr.bf16.mxu0 %v1813
          %2145 = vmatpush1.bf16.msra.mxu0 %v1812
          %2146 = vmatprep.subr.bf16.mxu0 %v1817
          %2147 = vmatpush1.bf16.msra.mxu0 %v1816
          %2148 = vmatprep.subr.bf16.mxu0 %v1821
          %2149 = vmatpush1.bf16.msra.mxu0 %v1820
          %2150 = vmatprep.subr.bf16.mxu0 %v1825
          %2151 = vmatpush1.bf16.msra.mxu0 %v1824
          %2152 = vmatprep.subr.bf16.mxu0 %v1829
          %2153 = vmatpush1.bf16.msra.mxu0 %v1828
          %2154 = vmatprep.subr.bf16.mxu0 %v1833
          %2155 = vmatpush1.bf16.msra.mxu0 %v1832
          %2156 = vmatprep.subr.bf16.mxu0 %v1837
          %2157 = vmatpush1.bf16.msra.mxu0 %v1836
          %2158 = vmatprep.subr.bf16.mxu0 %v1841
          %2159 = vmatpush1.bf16.msra.mxu0 %v1840
          %2160 = vmatprep.subr.bf16.mxu0 %v1845
          %2161 = vmatpush1.bf16.msra.mxu0 %v1844
          %2162 = vmatprep.subr.bf16.mxu0 %v1849
          %2163 = vmatpush1.bf16.msra.mxu0 %v1848
          %2164 = vmatprep.subr.bf16.mxu0 %v1853
          %2165 = vmatpush1.bf16.msra.mxu0 %v1852
          %2166 = vmatprep.subr.bf16.mxu0 %v1857
          %2167 = vmatpush1.bf16.msra.mxu0 %v1856
          %2168 = vmatprep.mubr.bf16.mxu0 %v1257
          %2169 = vmatmul.mubr.bf16.gmra.mrb[0].mxu0 %v1256
          %v2170 = vpop.f32.mrb[0].mxu0
          %v2171 = vadd.f32 %v1401, %v2170
          %v2172 = vpop.f32.mrb[0].mxu0
          %v2173 = vadd.f32 %v1405, %v2172
          %v2174 = vpop.f32.mrb[0].mxu0
          %v2175 = vadd.f32 %v1401, %v2174
          %v2176 = vpop.f32.mrb[0].mxu0
          %v2177 = vadd.f32 %v1405, %v2176
          %2178 = vdwg.mxu0
          %2179 = vmatprep.subr.bf16.mxu0 %v1861
          %2180 = vmatpush1.bf16.msra.mxu0 %v1860
          %2181 = vmatprep.subr.bf16.mxu0 %v1865
          %2182 = vmatpush1.bf16.msra.mxu0 %v1864
          %2183 = vmatprep.subr.bf16.mxu0 %v1869
          %2184 = vmatpush1.bf16.msra.mxu0 %v1868
          %2185 = vmatprep.subr.bf16.mxu0 %v1873
          %2186 = vmatpush1.bf16.msra.mxu0 %v1872
          %2187 = vmatprep.subr.bf16.mxu0 %v1877
          %2188 = vmatpush1.bf16.msra.mxu0 %v1876
          %2189 = vmatprep.subr.bf16.mxu0 %v1881
          %2190 = vmatpush1.bf16.msra.mxu0 %v1880
          %2191 = vmatprep.subr.bf16.mxu0 %v1885
          %2192 = vmatpush1.bf16.msra.mxu0 %v1884
          %2193 = vmatprep.subr.bf16.mxu0 %v1889
          %2194 = vmatpush1.bf16.msra.mxu0 %v1888
          %2195 = vmatprep.subr.bf16.mxu0 %v1893
          %2196 = vmatpush1.bf16.msra.mxu0 %v1892
          %2197 = vmatprep.subr.bf16.mxu0 %v1897
          %2198 = vmatpush1.bf16.msra.mxu0 %v1896
          %2199 = vmatprep.subr.bf16.mxu0 %v1901
          %2200 = vmatpush1.bf16.msra.mxu0 %v1900
          %2201 = vmatprep.subr.bf16.mxu0 %v1905
          %2202 = vmatpush1.bf16.msra.mxu0 %v1904
          %2203 = vmatprep.subr.bf16.mxu0 %v1909
          %2204 = vmatpush1.bf16.msra.mxu0 %v1908
          %2205 = vmatprep.subr.bf16.mxu0 %v1913
          %2206 = vmatpush1.bf16.msra.mxu0 %v1912
          %2207 = vmatprep.subr.bf16.mxu0 %v1917
          %2208 = vmatpush1.bf16.msra.mxu0 %v1916
          %2209 = vmatprep.subr.bf16.mxu0 %v1921
          %2210 = vmatpush1.bf16.msra.mxu0 %v1920
          %2211 = vmatprep.mubr.bf16.mxu0 %v1259
          %2212 = vmatmul.mubr.bf16.gmra.mrb[0].mxu0 %v1258
          %v2213 = vpop.f32.mrb[0].mxu0
          %v2214 = vadd.f32 %v2171, %v2213
          %v2215 = vpop.f32.mrb[0].mxu0
          %v2216 = vadd.f32 %v2173, %v2215
          %v2217 = vpop.f32.mrb[0].mxu0
          %v2218 = vadd.f32 %v2175, %v2217
          %v2219 = vpop.f32.mrb[0].mxu0
          %v2220 = vadd.f32 %v2177, %v2219
          %2221 = vdwg.mxu0
          %v2222 = vmax.f32 %v2128, 0.0
          %v2223 = vmax.f32 %v2130, 0.0
          %v2224 = vmax.f32 %v2214, 0.0
          %v2225 = vmax.f32 %v2216, 0.0
          %v2226 = vmax.f32 %v2132, 0.0
          %v2227 = vmax.f32 %v2134, 0.0
          %v2228 = vmax.f32 %v2218, 0.0
          %v2229 = vmax.f32 %v2220, 0.0
          %v2230 = vpack.c.bf16 %v2226, %v2222
          %v2231 = vpack.c.bf16 %v2227, %v2223
          %v2232 = vpack.c.bf16 %v2228, %v2224
          %v2233 = vpack.c.bf16 %v2229, %v2225
          %v2234 = vld [vmem:[#allocation13] sm:$0xf]
          %v2235 = vld [vmem:[#allocation13 + $0x4] sm:$0xf]
          %v2236 = vld [vmem:[#allocation13 + $0x8] sm:$0xf]
          %v2237 = vld [vmem:[#allocation13 + $0xc] sm:$0xf]
          %v2238 = vld [vmem:[#allocation13 + $0x10] sm:$0xf]
          %v2239 = vld [vmem:[#allocation13 + $0x14] sm:$0xf]
          %v2240 = vld [vmem:[#allocation13 + $0x18] sm:$0xf]
          %v2241 = vld [vmem:[#allocation13 + $0x1c] sm:$0xf]
          %v2242 = vld [vmem:[#allocation13 + $0x20] sm:$0xf]
          %v2243 = vld [vmem:[#allocation13 + $0x24] sm:$0xf]
          %v2244 = vld [vmem:[#allocation13 + $0x28] sm:$0xf]
          %v2245 = vld [vmem:[#allocation13 + $0x2c] sm:$0xf]
          %v2246 = vld [vmem:[#allocation13 + $0x30] sm:$0xf]
          %v2247 = vld [vmem:[#allocation13 + $0x34] sm:$0xf]
          %v2248 = vld [vmem:[#allocation13 + $0x38] sm:$0xf]
          %v2249 = vld [vmem:[#allocation13 + $0x3c] sm:$0xf]
          %v2250 = vld [vmem:[#allocation13 + $0x40] sm:$0xf]
          %v2251 = vld [vmem:[#allocation13 + $0x44] sm:$0xf]
          %v2252 = vld [vmem:[#allocation13 + $0x48] sm:$0xf]
          %v2253 = vld [vmem:[#allocation13 + $0x4c] sm:$0xf]
          %v2254 = vld [vmem:[#allocation13 + $0x50] sm:$0xf]
          %v2255 = vld [vmem:[#allocation13 + $0x54] sm:$0xf]
          %v2256 = vld [vmem:[#allocation13 + $0x58] sm:$0xf]
          %v2257 = vld [vmem:[#allocation13 + $0x5c] sm:$0xf]
          %v2258 = vld [vmem:[#allocation13 + $0x60] sm:$0xf]
          %v2259 = vld [vmem:[#allocation13 + $0x64] sm:$0xf]
          %v2260 = vld [vmem:[#allocation13 + $0x68] sm:$0xf]
          %v2261 = vld [vmem:[#allocation13 + $0x6c] sm:$0xf]
          %v2262 = vld [vmem:[#allocation13 + $0x70] sm:$0xf]
          %v2263 = vld [vmem:[#allocation13 + $0x74] sm:$0xf]
          %v2264 = vld [vmem:[#allocation13 + $0x78] sm:$0xf]
          %v2265 = vld [vmem:[#allocation13 + $0x7c] sm:$0xf]
          %v2266 = vld [vmem:[#allocation13 + $0x80] sm:$0xf]
          %v2267 = vld [vmem:[#allocation13 + $0x84] sm:$0xf]
          %v2268 = vld [vmem:[#allocation13 + $0x88] sm:$0xf]
          %v2269 = vld [vmem:[#allocation13 + $0x8c] sm:$0xf]
          %v2270 = vld [vmem:[#allocation13 + $0x90] sm:$0xf]
          %v2271 = vld [vmem:[#allocation13 + $0x94] sm:$0xf]
          %v2272 = vld [vmem:[#allocation13 + $0x98] sm:$0xf]
          %v2273 = vld [vmem:[#allocation13 + $0x9c] sm:$0xf]
          %v2274 = vld [vmem:[#allocation13 + $0xa0] sm:$0xf]
          %v2275 = vld [vmem:[#allocation13 + $0xa4] sm:$0xf]
          %v2276 = vld [vmem:[#allocation13 + $0xa8] sm:$0xf]
          %v2277 = vld [vmem:[#allocation13 + $0xac] sm:$0xf]
          %v2278 = vld [vmem:[#allocation13 + $0xb0] sm:$0xf]
          %v2279 = vld [vmem:[#allocation13 + $0xb4] sm:$0xf]
          %v2280 = vld [vmem:[#allocation13 + $0xb8] sm:$0xf]
          %v2281 = vld [vmem:[#allocation13 + $0xbc] sm:$0xf]
          %v2282 = vld [vmem:[#allocation13 + $0xc0] sm:$0xf]
          %v2283 = vld [vmem:[#allocation13 + $0xc4] sm:$0xf]
          %v2284 = vld [vmem:[#allocation13 + $0xc8] sm:$0xf]
          %v2285 = vld [vmem:[#allocation13 + $0xcc] sm:$0xf]
          %v2286 = vld [vmem:[#allocation13 + $0xd0] sm:$0xf]
          %v2287 = vld [vmem:[#allocation13 + $0xd4] sm:$0xf]
          %v2288 = vld [vmem:[#allocation13 + $0xd8] sm:$0xf]
          %v2289 = vld [vmem:[#allocation13 + $0xdc] sm:$0xf]
          %v2290 = vld [vmem:[#allocation13 + $0xe0] sm:$0xf]
          %v2291 = vld [vmem:[#allocation13 + $0xe4] sm:$0xf]
          %v2292 = vld [vmem:[#allocation13 + $0xe8] sm:$0xf]
          %v2293 = vld [vmem:[#allocation13 + $0xec] sm:$0xf]
          %v2294 = vld [vmem:[#allocation13 + $0xf0] sm:$0xf]
          %v2295 = vld [vmem:[#allocation13 + $0xf4] sm:$0xf]
          %v2296 = vld [vmem:[#allocation13 + $0xf8] sm:$0xf]
          %v2297 = vld [vmem:[#allocation13 + $0xfc] sm:$0xf]
          %v2298 = vld [vmem:[#allocation14] sm:$0x1]
          %v2300 = vlaneseq
          %v2301 = vshrl.u32 %v2300, 7
          %v2302 = vsub.s32 0, %v2301
          %v2303 = vrot.slane %v2298, %v2302
          %v2369 = vunpack.c.l.b16 %v2234
          %v2370 = vunpack.c.l.b16 %v2235
          %v2371 = vunpack.c.l.b16 %v2236
          %v2372 = vunpack.c.l.b16 %v2237
          %v2373 = vunpack.c.l.b16 %v2238
          %v2374 = vunpack.c.l.b16 %v2239
          %v2375 = vunpack.c.l.b16 %v2240
          %v2376 = vunpack.c.l.b16 %v2241
          %v2377 = vunpack.c.l.b16 %v2242
          %v2378 = vunpack.c.l.b16 %v2243
          %v2379 = vunpack.c.l.b16 %v2244
          %v2380 = vunpack.c.l.b16 %v2245
          %v2381 = vunpack.c.l.b16 %v2246
          %v2382 = vunpack.c.l.b16 %v2247
          %v2383 = vunpack.c.l.b16 %v2248
          %v2384 = vunpack.c.l.b16 %v2249
          %v2385 = vunpack.c.l.b16 %v2250
          %v2386 = vunpack.c.l.b16 %v2251
          %v2387 = vunpack.c.l.b16 %v2252
          %v2388 = vunpack.c.l.b16 %v2253
          %v2389 = vunpack.c.l.b16 %v2254
          %v2390 = vunpack.c.l.b16 %v2255
          %v2391 = vunpack.c.l.b16 %v2256
          %v2392 = vunpack.c.l.b16 %v2257
          %v2393 = vunpack.c.l.b16 %v2258
          %v2394 = vunpack.c.l.b16 %v2259
          %v2395 = vunpack.c.l.b16 %v2260
          %v2396 = vunpack.c.l.b16 %v2261
          %v2397 = vunpack.c.l.b16 %v2262
          %v2398 = vunpack.c.l.b16 %v2263
          %v2399 = vunpack.c.l.b16 %v2264
          %v2400 = vunpack.c.l.b16 %v2265
          %v2401 = vunpack.c.l.b16 %v2266
          %v2402 = vunpack.c.l.b16 %v2267
          %v2403 = vunpack.c.l.b16 %v2268
          %v2404 = vunpack.c.l.b16 %v2269
          %v2405 = vunpack.c.l.b16 %v2270
          %v2406 = vunpack.c.l.b16 %v2271
          %v2407 = vunpack.c.l.b16 %v2272
          %v2408 = vunpack.c.l.b16 %v2273
          %v2409 = vunpack.c.l.b16 %v2274
          %v2410 = vunpack.c.l.b16 %v2275
          %v2411 = vunpack.c.l.b16 %v2276
          %v2412 = vunpack.c.l.b16 %v2277
          %v2413 = vunpack.c.l.b16 %v2278
          %v2414 = vunpack.c.l.b16 %v2279
          %v2415 = vunpack.c.l.b16 %v2280
          %v2416 = vunpack.c.l.b16 %v2281
          %v2417 = vunpack.c.l.b16 %v2282
          %v2418 = vunpack.c.l.b16 %v2283
          %v2419 = vunpack.c.l.b16 %v2284
          %v2420 = vunpack.c.l.b16 %v2285
          %v2421 = vunpack.c.l.b16 %v2286
          %v2422 = vunpack.c.l.b16 %v2287
          %v2423 = vunpack.c.l.b16 %v2288
          %v2424 = vunpack.c.l.b16 %v2289
          %v2425 = vunpack.c.l.b16 %v2290
          %v2426 = vunpack.c.l.b16 %v2291
          %v2427 = vunpack.c.l.b16 %v2292
          %v2428 = vunpack.c.l.b16 %v2293
          %v2429 = vunpack.c.l.b16 %v2294
          %v2430 = vunpack.c.l.b16 %v2295
          %v2431 = vunpack.c.l.b16 %v2296
          %v2432 = vunpack.c.l.b16 %v2297
          %v2433 = vpack.c.b16 %v2370, %v2369
          %v2434 = vpack.c.b16 %v2372, %v2371
          %v2435 = vpack.c.b16 %v2374, %v2373
          %v2436 = vpack.c.b16 %v2376, %v2375
          %v2437 = vpack.c.b16 %v2378, %v2377
          %v2438 = vpack.c.b16 %v2380, %v2379
          %v2439 = vpack.c.b16 %v2382, %v2381
          %v2440 = vpack.c.b16 %v2384, %v2383
          %v2441 = vpack.c.b16 %v2386, %v2385
          %v2442 = vpack.c.b16 %v2388, %v2387
          %v2443 = vpack.c.b16 %v2390, %v2389
          %v2444 = vpack.c.b16 %v2392, %v2391
          %v2445 = vpack.c.b16 %v2394, %v2393
          %v2446 = vpack.c.b16 %v2396, %v2395
          %v2447 = vpack.c.b16 %v2398, %v2397
          %v2448 = vpack.c.b16 %v2400, %v2399
          %v2449 = vpack.c.b16 %v2402, %v2401
          %v2450 = vpack.c.b16 %v2404, %v2403
          %v2451 = vpack.c.b16 %v2406, %v2405
          %v2452 = vpack.c.b16 %v2408, %v2407
          %v2453 = vpack.c.b16 %v2410, %v2409
          %v2454 = vpack.c.b16 %v2412, %v2411
          %v2455 = vpack.c.b16 %v2414, %v2413
          %v2456 = vpack.c.b16 %v2416, %v2415
          %v2457 = vpack.c.b16 %v2418, %v2417
          %v2458 = vpack.c.b16 %v2420, %v2419
          %v2459 = vpack.c.b16 %v2422, %v2421
          %v2460 = vpack.c.b16 %v2424, %v2423
          %v2461 = vpack.c.b16 %v2426, %v2425
          %v2462 = vpack.c.b16 %v2428, %v2427
          %v2463 = vpack.c.b16 %v2430, %v2429
          %v2464 = vpack.c.b16 %v2432, %v2431
          %2497 = vmatprep.subr.bf16.mxu0 0
          %2498 = vmatpush1.bf16.msra.mxu0 %v2433
          %2499 = vmatprep.subr.bf16.mxu0 0
          %2500 = vmatpush1.bf16.msra.mxu0 %v2434
          %2501 = vmatprep.subr.bf16.mxu0 0
          %2502 = vmatpush1.bf16.msra.mxu0 %v2435
          %2503 = vmatprep.subr.bf16.mxu0 0
          %2504 = vmatpush1.bf16.msra.mxu0 %v2436
          %2505 = vmatprep.subr.bf16.mxu0 0
          %2506 = vmatpush1.bf16.msra.mxu0 %v2437
          %2507 = vmatprep.subr.bf16.mxu0 0
          %2508 = vmatpush1.bf16.msra.mxu0 %v2438
          %2509 = vmatprep.subr.bf16.mxu0 0
          %2510 = vmatpush1.bf16.msra.mxu0 %v2439
          %2511 = vmatprep.subr.bf16.mxu0 0
          %2512 = vmatpush1.bf16.msra.mxu0 %v2440
          %2513 = vmatprep.subr.bf16.mxu0 0
          %2514 = vmatpush1.bf16.msra.mxu0 %v2441
          %2515 = vmatprep.subr.bf16.mxu0 0
          %2516 = vmatpush1.bf16.msra.mxu0 %v2442
          %2517 = vmatprep.subr.bf16.mxu0 0
          %2518 = vmatpush1.bf16.msra.mxu0 %v2443
          %2519 = vmatprep.subr.bf16.mxu0 0
          %2520 = vmatpush1.bf16.msra.mxu0 %v2444
          %2521 = vmatprep.subr.bf16.mxu0 0
          %2522 = vmatpush1.bf16.msra.mxu0 %v2445
          %2523 = vmatprep.subr.bf16.mxu0 0
          %2524 = vmatpush1.bf16.msra.mxu0 %v2446
          %2525 = vmatprep.subr.bf16.mxu0 0
          %2526 = vmatpush1.bf16.msra.mxu0 %v2447
          %2527 = vmatprep.subr.bf16.mxu0 0
          %2528 = vmatpush1.bf16.msra.mxu0 %v2448
          %2529 = vmatprep.mubr.bf16.mxu0 %v2231
          %2530 = vmatmul.mubr.bf16.gmra.mrb[0].mxu0 %v2230
          %v2531 = vpop.f32.mrb[0].mxu0
          %v2532 = vadd.f32 %v2303, %v2531
          %v2533 = vpop.f32.mrb[0].mxu0
          %v2534 = vpop.f32.mrb[0].mxu0
          %v2535 = vadd.f32 %v2303, %v2534
          %v2536 = vpop.f32.mrb[0].mxu0
          %2537 = vdwg.mxu0
          %2538 = vmatprep.subr.bf16.mxu0 0
          %2539 = vmatpush1.bf16.msra.mxu0 %v2449
          %2540 = vmatprep.subr.bf16.mxu0 0
          %2541 = vmatpush1.bf16.msra.mxu0 %v2450
          %2542 = vmatprep.subr.bf16.mxu0 0
          %2543 = vmatpush1.bf16.msra.mxu0 %v2451
          %2544 = vmatprep.subr.bf16.mxu0 0
          %2545 = vmatpush1.bf16.msra.mxu0 %v2452
          %2546 = vmatprep.subr.bf16.mxu0 0
          %2547 = vmatpush1.bf16.msra.mxu0 %v2453
          %2548 = vmatprep.subr.bf16.mxu0 0
          %2549 = vmatpush1.bf16.msra.mxu0 %v2454
          %2550 = vmatprep.subr.bf16.mxu0 0
          %2551 = vmatpush1.bf16.msra.mxu0 %v2455
          %2552 = vmatprep.subr.bf16.mxu0 0
          %2553 = vmatpush1.bf16.msra.mxu0 %v2456
          %2554 = vmatprep.subr.bf16.mxu0 0
          %2555 = vmatpush1.bf16.msra.mxu0 %v2457
          %2556 = vmatprep.subr.bf16.mxu0 0
          %2557 = vmatpush1.bf16.msra.mxu0 %v2458
          %2558 = vmatprep.subr.bf16.mxu0 0
          %2559 = vmatpush1.bf16.msra.mxu0 %v2459
          %2560 = vmatprep.subr.bf16.mxu0 0
          %2561 = vmatpush1.bf16.msra.mxu0 %v2460
          %2562 = vmatprep.subr.bf16.mxu0 0
          %2563 = vmatpush1.bf16.msra.mxu0 %v2461
          %2564 = vmatprep.subr.bf16.mxu0 0
          %2565 = vmatpush1.bf16.msra.mxu0 %v2462
          %2566 = vmatprep.subr.bf16.mxu0 0
          %2567 = vmatpush1.bf16.msra.mxu0 %v2463
          %2568 = vmatprep.subr.bf16.mxu0 0
          %2569 = vmatpush1.bf16.msra.mxu0 %v2464
          %2570 = vmatprep.mubr.bf16.mxu0 %v2233
          %2571 = vmatmul.mubr.bf16.gmra.mrb[0].mxu0 %v2232
          %v2572 = vpop.f32.mrb[0].mxu0
          %v2573 = vadd.f32 %v2532, %v2572
          %v2574 = vpop.f32.mrb[0].mxu0
          %v2575 = vpop.f32.mrb[0].mxu0
          %v2576 = vadd.f32 %v2535, %v2575
          %v2577 = vpop.f32.mrb[0].mxu0
          %2578 = vdwg.mxu0
          %2579 = vst [vmem:[%s532] sm:$0xff] %v2573
          %2580 = vst [vmem:[%s532 + $0x8] sm:$0xff] %v2576
        $region96: #{decoder_forward.1} parent=55 // pred_fallthru
          _
        %s2581 = smul.u32 2, %s33
        %p2582 = scmp.lt.s32.totalorder %s2581, 1
        %s2583 = scalar_select %p2582, %s2581, 1
        %s2584 = smul.addr %s2583, 8
        %s2585 = scalar_lea.vmem %s9, %s2584
        // Predicated region
        $region97: #{decoder_forward.1} parent=55 // pred_check
          %p2586 = pneg %p268
        $region98: #{decoder_forward.1} parent=55 // pred_check_branch
          %2588 = sbr.rel (%p2586) target = $region100
        $region99: #{decoder_forward.1} parent=55 // pred_region
          %s2589 = smul.u32 2, %s33
        $region100: #{decoder_forward.1} parent=55 // pred_fallthru
          _
        // Predicated region
        $region101: #{decoder_forward.1} parent=55 // pred_check
          %p2590 = pneg %p268
        $region102: #{decoder_forward.1} parent=55 // pred_check_branch
          %2592 = sbr.rel (%p2590) target = $region104
        $region103: #{decoder_forward.1} parent=55 // pred_region
          %s2593 = smul.u32 2, %s33
          %p2594 = scmp.lt.s32.totalorder %s2593, 1
          %s2595 = scalar_select %p2594, %s2593, 1
          %s2596 = smul.addr %s2595, 8
          %s2597 = scalar_lea.vmem %s9, %s2596
        $region104: #{decoder_forward.1} parent=55 // pred_fallthru
          _
      $region56: #{decoder_forward.1} parent=5 // pred_fallthru
        _
      %p2598 = scmp.le.s32.totalorder 2, %s24
      // Predicated region
      $region105: #{decoder_forward.1} parent=5 // pred_check
        %p2599 = pneg %p2598
      $region106: #{decoder_forward.1} parent=5 // pred_check_branch
        %2601 = sbr.rel (%p2599) target = $region108
      $region107: #{decoder_forward.1} parent=5 // pred_region
        %s2602 = ssub.s32 %s24, 2
      $region108: #{decoder_forward.1} parent=5 // pred_fallthru
        _
    $region6: #{decoder_forward.1} parent=1 // loop_footer
      %s28 = sadd.s32 1, %s24
    $region7: #{decoder_forward.1} parent=1 // loop_footer_branch
      %23 = sbr.rel target = $region3
    $region8: #{decoder_forward.1} parent=1 // loop_exit
      _
    %2603 = vsyncpa [#allocation4], 1
    %s2604 = scalar_lea.sflag [#allocation4], 1
    %2605 = vsyncpa %s2604, 1
    %2606 = vsyncpa [#allocation6], 1
    %s2607 = scalar_lea.sflag [#allocation6], 1
    %2608 = vsyncpa %s2607, 1
    %2609 = vsyncpa [#allocation9], 1
    %2610 = vsyncpa [#allocation12], 1
    %2611 = vsyncpa [#allocation15], 1

</llo_original>
